<compile_context>
chip_gen: v7x
topology: tpu7x:2x2x1
jax: 0.10.0
libtpu: 0.0.40
codegen_flags: <defaults>
</compile_context>

<pallas_src>
import numpy as np
import jax
import jax.numpy as jnp
from jax.experimental import pallas as pl
from jax.experimental.pallas import tpu as pltpu


# ----------------------------------------------------------------------------
# Static per-block configuration (mirrors TCN.__init__).
# ----------------------------------------------------------------------------
_BF16_SUBLANE = 16  # sublane packing granularity for bf16 scratch


def _round_up(x, m):
    return ((x + m - 1) // m) * m


def _block_configs(num_inputs, num_channels, kernel_size):
    cfgs = []
    c_prev = num_inputs
    for i, c_out in enumerate(num_channels):
        d = 2 ** i
        pad = (kernel_size - 1) * d
        cfgs.append(dict(
            c_in=c_prev, c_out=c_out, k=kernel_size, d=d, pad=pad,
            pad_a=_round_up(pad, _BF16_SUBLANE),          # aligned causal pad rows
            c_in_p=max(128, _round_up(c_prev, 128)),      # lane-dense channels
            c_out_p=max(128, _round_up(c_out, 128)),
            has_down=(c_prev != c_out)))
        c_prev = c_out
    return cfgs


# ----------------------------------------------------------------------------
# Fused TCN kernel: all temporal blocks + residuals, one batch element per
# grid step.  Activations live in vregs; two reusable padded VMEM buffers
# realize the causal time shifts as static sublane slices.
# ----------------------------------------------------------------------------
def _make_tcn_kernel(L, cfgs):
    n_w = sum(6 if c["has_down"] else 4 for c in cfgs)

    def kernel(*refs):
        x_ref = refs[0]
        w_refs = refs[1:1 + n_w]
        out_ref = refs[1 + n_w]
        buf1, buf2 = refs[2 + n_w], refs[3 + n_w]

        def causal_conv(inp, w_ref, b_ref, buf_ref, cfg, c_in_p):
            k, d, pad_a = cfg["k"], cfg["d"], cfg["pad_a"]
            # Zero only the causal pad rows; the activation region is overwritten.
            if pad_a > 0:
                buf_ref[0:pad_a, 0:c_in_p] = jnp.zeros((pad_a, c_in_p),
                                                       jnp.bfloat16)
            buf_ref[pad_a:pad_a + L, 0:c_in_p] = inp.astype(jnp.bfloat16)
            # k shifted views -> one (L, k*C_in_p) im2col tile -> one MXU matmul.
            taps = [buf_ref[pad_a - (k - 1 - j) * d:
                            pad_a - (k - 1 - j) * d + L, 0:c_in_p]
                    for j in range(k)]
            im2col = taps[0] if k == 1 else jnp.concatenate(taps, axis=-1)
            bias = b_ref[...]                                   # read once, (1,Cp)
            return jnp.dot(im2col, w_ref[...],
                           preferred_element_type=jnp.float32) + bias

        cur = x_ref[0]                                          # (L, C_in_p0) f32
        wi = 0
        for cfg in cfgs:
            w1, b1, w2, b2 = w_refs[wi:wi + 4]
            wi += 4
            wd = bd = None
            if cfg["has_down"]:
                wd, bd = w_refs[wi:wi + 2]
                wi += 2

            # conv1 -> chomp -> relu -> dropout(identity)
            h = jnp.maximum(
                causal_conv(cur, w1, b1, buf1, cfg, cfg["c_in_p"]), 0.0)
            # TODO(synk): Dropout(p=0.2) implemented as identity (eval-mode forward).
            # conv2 -> chomp -> relu -> dropout(identity)
            h = jnp.maximum(
                causal_conv(h, w2, b2, buf2, cfg, cfg["c_out_p"]), 0.0)

            # residual branch (1x1 conv iff channel count changes)
            if wd is not None:
                res = jnp.dot(cur.astype(jnp.bfloat16), wd[...],
                              preferred_element_type=jnp.float32) + bd[...]
            else:
                res = cur

            cur = jnp.maximum(h + res, 0.0)

        out_ref[0] = cur.astype(out_ref.dtype)

    return kernel


# ----------------------------------------------------------------------------
# Wrapper: PyTorch (B, C, L) layout in/out, one fused pallas_call inside.
# Params use the PyTorch layout; weight re-layout / channel padding / bf16 cast
# happen once on the host side of the call.
# ----------------------------------------------------------------------------
def make_tcn_forward(num_inputs, num_channels, kernel_size):
    cfgs = _block_configs(num_inputs, num_channels, kernel_size)

    @jax.jit
    def forward(params, x_bcl):
        B, _, L = x_bcl.shape
        c_in0_p = cfgs[0]["c_in_p"]
        c_last = cfgs[-1]["c_out"]
        c_last_p = cfgs[-1]["c_out_p"]

        # (B, C, L) -> (B, L, C_pad): channel-last, lane-dense (pad to 128).
        x = jnp.transpose(x_bcl, (0, 2, 1)).astype(jnp.float32)
        x = jnp.pad(x, ((0, 0), (0, 0), (0, c_in0_p - num_inputs)))

        def prep_conv_w(w, c_in_p, c_out_p):
            # torch (c_out, c_in, k) -> im2col layout (k*c_in_p, c_out_p), bf16.
            c_out, c_in, kk = w.shape
            wt = jnp.transpose(w, (2, 1, 0))                    # (k, c_in, c_out)
            wt = jnp.pad(wt, ((0, 0), (0, c_in_p - c_in), (0, c_out_p - c_out)))
            return wt.reshape(kk * c_in_p, c_out_p).astype(jnp.bfloat16)

        def prep_bias(b, c_out_p):
            return jnp.pad(b, (0, c_out_p - b.shape[0])).astype(jnp.float32)[None, :]

        flat_w = []
        for p, cfg in zip(params, cfgs):
            flat_w += [prep_conv_w(p["w1"], cfg["c_in_p"], cfg["c_out_p"]),
                       prep_bias(p["b1"], cfg["c_out_p"]),
                       prep_conv_w(p["w2"], cfg["c_out_p"], cfg["c_out_p"]),
                       prep_bias(p["b2"], cfg["c_out_p"])]
            if cfg["has_down"]:
                wd = jnp.transpose(p["wd"][:, :, 0], (1, 0))    # (c_in, c_out)
                wd = jnp.pad(wd, ((0, cfg["c_in_p"] - cfg["c_in"]),
                                  (0, cfg["c_out_p"] - cfg["c_out"])))
                flat_w += [wd.astype(jnp.bfloat16),
                           prep_bias(p["bd"], cfg["c_out_p"])]

        # Two reusable padded scratch buffers (depth-independent VMEM).
        c_max_p = max(max(c["c_in_p"], c["c_out_p"]) for c in cfgs)
        rows = max(c["pad_a"] for c in cfgs) + L
        scratch = [pltpu.VMEM((rows, c_max_p), jnp.bfloat16),
                   pltpu.VMEM((rows, c_max_p), jnp.bfloat16)]

        out_shape = jax.ShapeDtypeStruct((B, L, c_last_p), jnp.float32)

        # Working-set estimate -> explicit scoped-VMEM limit (with headroom).
        w_bytes = sum(int(np.prod(w.shape)) * w.dtype.itemsize for w in flat_w)
        resident = (2 * 4 * L * c_in0_p           # x block, double-buffered
                    + 2 * 4 * L * c_last_p        # out block, double-buffered
                    + 2 * w_bytes                 # resident weights (+headroom)
                    + 2 * 2 * rows * c_max_p)     # 2 bf16 scratch buffers
        vmem_limit = int(min(max(resident * 2 + (4 << 20), 16 << 20), 64 << 20))

        # Advisory cost hint (padded dims = actual compute).
        flops = 0
        for cfg in cfgs:
            k = cfg["k"]
            flops += 2 * B * L * k * cfg["c_in_p"] * cfg["c_out_p"]     # conv1
            flops += 2 * B * L * k * cfg["c_out_p"] * cfg["c_out_p"]    # conv2
            if cfg["has_down"]:
                flops += 2 * B * L * cfg["c_in_p"] * cfg["c_out_p"]
        bytes_accessed = (4 * B * L * c_in0_p + w_bytes + 4 * B * L * c_last_p)

        y = pl.pallas_call(
            _make_tcn_kernel(L, cfgs),
            out_shape=out_shape,
            grid_spec=pltpu.PrefetchScalarGridSpec(
                num_scalar_prefetch=0,
                grid=(B,),
                in_specs=[pl.BlockSpec((1, L, c_in0_p), lambda b: (b, 0, 0))]
                         + [pl.BlockSpec(w.shape, lambda b: (0, 0))
                            for w in flat_w],
                out_specs=pl.BlockSpec((1, L, c_last_p), lambda b: (b, 0, 0)),
                scratch_shapes=scratch,
            ),
            compiler_params=pltpu.CompilerParams(
                dimension_semantics=("parallel",),
                vmem_limit_bytes=vmem_limit,
            ),
            cost_estimate=pl.CostEstimate(
                flops=flops, transcendentals=0, bytes_accessed=bytes_accessed),
        )(x, *flat_w)

        y = y[:, :, :c_last]                       # drop channel padding
        return jnp.transpose(y, (0, 2, 1))         # back to (B, C_out, L)

    return forward


# ----------------------------------------------------------------------------
# Parameter construction, PyTorch layout & init:
#   conv weight (c_out, c_in, k) ~ N(0, 0.01); bias uniform(+-1/sqrt(fan_in)).
# ----------------------------------------------------------------------------
def init_params(key, num_inputs, num_channels, kernel_size):
    cfgs = _block_configs(num_inputs, num_channels, kernel_size)
    params = []
    for cfg in cfgs:
        c_in, c_out, k = cfg["c_in"], cfg["c_out"], cfg["k"]
        key, k1, k2, k3, k4, k5, k6 = jax.random.split(key, 7)
        block = {
            "w1": 0.01 * jax.random.normal(k1, (c_out, c_in, k), jnp.float32),
            "b1": jax.random.uniform(k2, (c_out,), jnp.float32,
                                     -1.0 / np.sqrt(c_in * k),
                                     1.0 / np.sqrt(c_in * k)),
            "w2": 0.01 * jax.random.normal(k3, (c_out, c_out, k), jnp.float32),
            "b2": jax.random.uniform(k4, (c_out,), jnp.float32,
                                     -1.0 / np.sqrt(c_out * k),
                                     1.0 / np.sqrt(c_out * k)),
        }
        if cfg["has_down"]:
            block["wd"] = 0.01 * jax.random.normal(k5, (c_out, c_in, 1), jnp.float32)
            block["bd"] = jax.random.uniform(k6, (c_out,), jnp.float32,
                                             -1.0 / np.sqrt(c_in),
                                             1.0 / np.sqrt(c_in))
        params.append(block)
    return params


# ----------------------------------------------------------------------------
# Pure-JAX f32 reference (independent code path) for a silent correctness check.
# ----------------------------------------------------------------------------
def reference_forward(params, x_bcl, num_inputs, num_channels, kernel_size):
    x = x_bcl.astype(jnp.float32)                  # (B, C, L)
    B, _, L = x.shape
    k = kernel_size
    c_prev = num_inputs
    for i, (p, c_out) in enumerate(zip(params, num_channels)):
        d = 2 ** i
        pad = (k - 1) * d

        def cconv(a, w, b):
            a_pad = jnp.pad(a, ((0, 0), (0, 0), (pad, 0)))
            out = jnp.zeros((B, w.shape[0], L), jnp.float32)
            for j in range(k):
                out = out + jnp.einsum("bcl,oc->bol",
                                       a_pad[:, :, j * d:j * d + L], w[:, :, j])
            return out + b[None, :, None]

        h = jax.nn.relu(cconv(x, p["w1"], p["b1"]))
        h = jax.nn.relu(cconv(h, p["w2"], p["b2"]))
        if c_prev != c_out:
            res = (jnp.einsum("bcl,oc->bol", x, p["wd"][:, :, 0])
                   + p["bd"][None, :, None])
        else:
            res = x
        x = jax.nn.relu(h + res)
        c_prev = c_out
    return x


if __name__ == "__main__":
    # Small shapes consistent with TCN.forward (Conv1d layout: (B, C_in, L)).
    batch = 2
    seq_len = 16
    num_inputs = 4
    num_channels = [32, 32]    # two temporal blocks, dilations 1 and 2
    kernel_size = 2

    key = jax.random.PRNGKey(0)
    key, pkey, xkey = jax.random.split(key, 3)
    params = init_params(pkey, num_inputs, num_channels, kernel_size)
    x = jax.random.normal(xkey, (batch, num_inputs, seq_len), jnp.float32)

    forward = make_tcn_forward(num_inputs, num_channels, kernel_size)
    out = jax.block_until_ready(forward(params, x))

    ref = reference_forward(params, x, num_inputs, num_channels, kernel_size)
    # Kernel uses bf16 MXU inputs (f32 accumulation) vs. an f32 reference, so the
    # tolerance is loosened accordingly; structural errors would be O(0.1).
    np.testing.assert_allclose(np.asarray(out), np.asarray(ref),
                               rtol=2e-2, atol=5e-3)

    assert out.shape == (batch, num_channels[-1], seq_len)
    print("KERNEL_OK")
</pallas_src>

<mosaic_0001>
module attributes {stable_mosaic.version = 11 : i64} {
  func.func @kernel(%arg0: i32, %arg1: memref<1x16x128xf32, #tpu.memory_space<vmem>>, %arg2: memref<256x128xbf16, #tpu.memory_space<vmem>>, %arg3: memref<1x128xf32, #tpu.memory_space<vmem>>, %arg4: memref<256x128xbf16, #tpu.memory_space<vmem>>, %arg5: memref<1x128xf32, #tpu.memory_space<vmem>>, %arg6: memref<128x128xbf16, #tpu.memory_space<vmem>>, %arg7: memref<1x128xf32, #tpu.memory_space<vmem>>, %arg8: memref<256x128xbf16, #tpu.memory_space<vmem>>, %arg9: memref<1x128xf32, #tpu.memory_space<vmem>>, %arg10: memref<256x128xbf16, #tpu.memory_space<vmem>>, %arg11: memref<1x128xf32, #tpu.memory_space<vmem>>, %arg12: memref<1x16x128xf32, #tpu.memory_space<vmem>>, %arg13: memref<32x128xbf16, #tpu.memory_space<vmem>>, %arg14: memref<32x128xbf16, #tpu.memory_space<vmem>>) attributes {dimension_semantics = [#tpu.dimension_semantics<parallel>], iteration_bounds = array<i64: 2>, scalar_prefetch = 0 : i64, scratch_operands = 2 : i64, tpu.core_type = #tpu.core_type<tc>, window_params = [{transform_indices = @transform_0, window_bounds = array<i64: 1, 16, 128>}, {pipeline_mode = #tpu.pipeline_mode<synchronous>, transform_indices = @transform_1, window_bounds = array<i64: 256, 128>}, {pipeline_mode = #tpu.pipeline_mode<synchronous>, transform_indices = @transform_2, window_bounds = array<i64: 1, 128>}, {pipeline_mode = #tpu.pipeline_mode<synchronous>, transform_indices = @transform_3, window_bounds = array<i64: 256, 128>}, {pipeline_mode = #tpu.pipeline_mode<synchronous>, transform_indices = @transform_4, window_bounds = array<i64: 1, 128>}, {pipeline_mode = #tpu.pipeline_mode<synchronous>, transform_indices = @transform_5, window_bounds = array<i64: 128, 128>}, {pipeline_mode = #tpu.pipeline_mode<synchronous>, transform_indices = @transform_6, window_bounds = array<i64: 1, 128>}, {pipeline_mode = #tpu.pipeline_mode<synchronous>, transform_indices = @transform_7, window_bounds = array<i64: 256, 128>}, {pipeline_mode = #tpu.pipeline_mode<synchronous>, transform_indices = @transform_8, window_bounds = array<i64: 1, 128>}, {pipeline_mode = #tpu.pipeline_mode<synchronous>, transform_indices = @transform_9, window_bounds = array<i64: 256, 128>}, {pipeline_mode = #tpu.pipeline_mode<synchronous>, transform_indices = @transform_10, window_bounds = array<i64: 1, 128>}, {transform_indices = @transform_11, window_bounds = array<i64: 1, 16, 128>}]} {
    %c0 = arith.constant 0 : index
    %c0_0 = arith.constant 0 : index
    %c0_1 = arith.constant 0 : index
    %0 = vector.load %arg1[%c0, %c0_0, %c0_1] : memref<1x16x128xf32, #tpu.memory_space<vmem>>, vector<1x16x128xf32>
    %1 = vector.shape_cast %0 : vector<1x16x128xf32> to vector<16x128xf32>
    %cst = arith.constant 0.000000e+00 : bf16
    %2 = vector.broadcast %cst : bf16 to vector<16x128xbf16>
    %c0_2 = arith.constant 0 : index
    %c0_3 = arith.constant 0 : index
    %3 = vector.load %arg13[%c0_2, %c0_3] : memref<32x128xbf16, #tpu.memory_space<vmem>>, vector<16x128xbf16>
    tpu.vector_store %arg13[%c0_2, %c0_3], %2 {strides = array<i32>} : memref<32x128xbf16, #tpu.memory_space<vmem>>, vector<16x128xbf16>,
    %4 = arith.truncf %1 : vector<16x128xf32> to vector<16x128xbf16>
    %c16 = arith.constant 16 : index
    %c0_4 = arith.constant 0 : index
    %5 = vector.load %arg13[%c16, %c0_4] : memref<32x128xbf16, #tpu.memory_space<vmem>>, vector<16x128xbf16>
    tpu.vector_store %arg13[%c16, %c0_4], %4 {strides = array<i32>} : memref<32x128xbf16, #tpu.memory_space<vmem>>, vector<16x128xbf16>,
    %c15 = arith.constant 15 : index
    %c0_5 = arith.constant 0 : index
    %6 = vector.load %arg13[%c15, %c0_5] : memref<32x128xbf16, #tpu.memory_space<vmem>>, vector<16x128xbf16>
    %c16_6 = arith.constant 16 : index
    %c0_7 = arith.constant 0 : index
    %7 = vector.load %arg13[%c16_6, %c0_7] : memref<32x128xbf16, #tpu.memory_space<vmem>>, vector<16x128xbf16>
    %8 = tpu.concatenate %6, %7 in 1 : vector<16x128xbf16>, vector<16x128xbf16> -> vector<16x256xbf16>
    %c0_8 = arith.constant 0 : index
    %c0_9 = arith.constant 0 : index
    %9 = vector.load %arg3[%c0_8, %c0_9] : memref<1x128xf32, #tpu.memory_space<vmem>>, vector<1x128xf32>
    %c0_10 = arith.constant 0 : index
    %c0_11 = arith.constant 0 : index
    %10 = vector.load %arg2[%c0_10, %c0_11] : memref<256x128xbf16, #tpu.memory_space<vmem>>, vector<256x128xbf16>
    %cst_12 = arith.constant dense<0.000000e+00> : vector<16x128xf32>
    %11 = tpu.matmul %8, %10, %cst_12 {dimension_numbers = #tpu.dot_dimension_numbers<[1], [0], [0], [1], [0, 0, 1, 1], [], []>} : vector<16x256xbf16>, vector<256x128xbf16>, vector<16x128xf32> -> vector<16x128xf32>
    %12 = vector.broadcast %9 : vector<1x128xf32> to vector<16x128xf32>
    %13 = arith.addf %11, %12 : vector<16x128xf32>
    %cst_13 = arith.constant 0.000000e+00 : f32
    %14 = vector.broadcast %cst_13 : f32 to vector<16x128xf32>
    %15 = arith.maximumf %13, %14 : vector<16x128xf32>
    %cst_14 = arith.constant 0.000000e+00 : bf16
    %16 = vector.broadcast %cst_14 : bf16 to vector<16x128xbf16>
    %c0_15 = arith.constant 0 : index
    %c0_16 = arith.constant 0 : index
    %17 = vector.load %arg14[%c0_15, %c0_16] : memref<32x128xbf16, #tpu.memory_space<vmem>>, vector<16x128xbf16>
    tpu.vector_store %arg14[%c0_15, %c0_16], %16 {strides = array<i32>} : memref<32x128xbf16, #tpu.memory_space<vmem>>, vector<16x128xbf16>,
    %18 = arith.truncf %15 : vector<16x128xf32> to vector<16x128xbf16>
    %c16_17 = arith.constant 16 : index
    %c0_18 = arith.constant 0 : index
    %19 = vector.load %arg14[%c16_17, %c0_18] : memref<32x128xbf16, #tpu.memory_space<vmem>>, vector<16x128xbf16>
    tpu.vector_store %arg14[%c16_17, %c0_18], %18 {strides = array<i32>} : memref<32x128xbf16, #tpu.memory_space<vmem>>, vector<16x128xbf16>,
    %c15_19 = arith.constant 15 : index
    %c0_20 = arith.constant 0 : index
    %20 = vector.load %arg14[%c15_19, %c0_20] : memref<32x128xbf16, #tpu.memory_space<vmem>>, vector<16x128xbf16>
    %c16_21 = arith.constant 16 : index
    %c0_22 = arith.constant 0 : index
    %21 = vector.load %arg14[%c16_21, %c0_22] : memref<32x128xbf16, #tpu.memory_space<vmem>>, vector<16x128xbf16>
    %22 = tpu.concatenate %20, %21 in 1 : vector<16x128xbf16>, vector<16x128xbf16> -> vector<16x256xbf16>
    %c0_23 = arith.constant 0 : index
    %c0_24 = arith.constant 0 : index
    %23 = vector.load %arg5[%c0_23, %c0_24] : memref<1x128xf32, #tpu.memory_space<vmem>>, vector<1x128xf32>
    %c0_25 = arith.constant 0 : index
    %c0_26 = arith.constant 0 : index
    %24 = vector.load %arg4[%c0_25, %c0_26] : memref<256x128xbf16, #tpu.memory_space<vmem>>, vector<256x128xbf16>
    %cst_27 = arith.constant dense<0.000000e+00> : vector<16x128xf32>
    %25 = tpu.matmul %22, %24, %cst_27 {dimension_numbers = #tpu.dot_dimension_numbers<[1], [0], [0], [1], [0, 0, 1, 1], [], []>} : vector<16x256xbf16>, vector<256x128xbf16>, vector<16x128xf32> -> vector<16x128xf32>
    %26 = vector.broadcast %23 : vector<1x128xf32> to vector<16x128xf32>
    %27 = arith.addf %25, %26 : vector<16x128xf32>
    %cst_28 = arith.constant 0.000000e+00 : f32
    %28 = vector.broadcast %cst_28 : f32 to vector<16x128xf32>
    %29 = arith.maximumf %27, %28 : vector<16x128xf32>
    %30 = arith.truncf %1 : vector<16x128xf32> to vector<16x128xbf16>
    %c0_29 = arith.constant 0 : index
    %c0_30 = arith.constant 0 : index
    %31 = vector.load %arg6[%c0_29, %c0_30] : memref<128x128xbf16, #tpu.memory_space<vmem>>, vector<128x128xbf16>
    %cst_31 = arith.constant dense<0.000000e+00> : vector<16x128xf32>
    %32 = tpu.matmul %30, %31, %cst_31 {dimension_numbers = #tpu.dot_dimension_numbers<[1], [0], [0], [1], [0, 0, 1, 1], [], []>} : vector<16x128xbf16>, vector<128x128xbf16>, vector<16x128xf32> -> vector<16x128xf32>
    %c0_32 = arith.constant 0 : index
    %c0_33 = arith.constant 0 : index
    %33 = vector.load %arg7[%c0_32, %c0_33] : memref<1x128xf32, #tpu.memory_space<vmem>>, vector<1x128xf32>
    %34 = vector.broadcast %33 : vector<1x128xf32> to vector<16x128xf32>
    %35 = arith.addf %32, %34 : vector<16x128xf32>
    %36 = arith.addf %29, %35 : vector<16x128xf32>
    %cst_34 = arith.constant 0.000000e+00 : f32
    %37 = vector.broadcast %cst_34 : f32 to vector<16x128xf32>
    %38 = arith.maximumf %36, %37 : vector<16x128xf32>
    %cst_35 = arith.constant 0.000000e+00 : bf16
    %39 = vector.broadcast %cst_35 : bf16 to vector<16x128xbf16>
    %c0_36 = arith.constant 0 : index
    %c0_37 = arith.constant 0 : index
    %40 = vector.load %arg13[%c0_36, %c0_37] : memref<32x128xbf16, #tpu.memory_space<vmem>>, vector<16x128xbf16>
    tpu.vector_store %arg13[%c0_36, %c0_37], %39 {strides = array<i32>} : memref<32x128xbf16, #tpu.memory_space<vmem>>, vector<16x128xbf16>,
    %41 = arith.truncf %38 : vector<16x128xf32> to vector<16x128xbf16>
    %c16_38 = arith.constant 16 : index
    %c0_39 = arith.constant 0 : index
    %42 = vector.load %arg13[%c16_38, %c0_39] : memref<32x128xbf16, #tpu.memory_space<vmem>>, vector<16x128xbf16>
    tpu.vector_store %arg13[%c16_38, %c0_39], %41 {strides = array<i32>} : memref<32x128xbf16, #tpu.memory_space<vmem>>, vector<16x128xbf16>,
    %c14 = arith.constant 14 : index
    %c0_40 = arith.constant 0 : index
    %43 = vector.load %arg13[%c14, %c0_40] : memref<32x128xbf16, #tpu.memory_space<vmem>>, vector<16x128xbf16>
    %c16_41 = arith.constant 16 : index
    %c0_42 = arith.constant 0 : index
    %44 = vector.load %arg13[%c16_41, %c0_42] : memref<32x128xbf16, #tpu.memory_space<vmem>>, vector<16x128xbf16>
    %45 = tpu.concatenate %43, %44 in 1 : vector<16x128xbf16>, vector<16x128xbf16> -> vector<16x256xbf16>
    %c0_43 = arith.constant 0 : index
    %c0_44 = arith.constant 0 : index
    %46 = vector.load %arg9[%c0_43, %c0_44] : memref<1x128xf32, #tpu.memory_space<vmem>>, vector<1x128xf32>
    %c0_45 = arith.constant 0 : index
    %c0_46 = arith.constant 0 : index
    %47 = vector.load %arg8[%c0_45, %c0_46] : memref<256x128xbf16, #tpu.memory_space<vmem>>, vector<256x128xbf16>
    %cst_47 = arith.constant dense<0.000000e+00> : vector<16x128xf32>
    %48 = tpu.matmul %45, %47, %cst_47 {dimension_numbers = #tpu.dot_dimension_numbers<[1], [0], [0], [1], [0, 0, 1, 1], [], []>} : vector<16x256xbf16>, vector<256x128xbf16>, vector<16x128xf32> -> vector<16x128xf32>
    %49 = vector.broadcast %46 : vector<1x128xf32> to vector<16x128xf32>
    %50 = arith.addf %48, %49 : vector<16x128xf32>
    %cst_48 = arith.constant 0.000000e+00 : f32
    %51 = vector.broadcast %cst_48 : f32 to vector<16x128xf32>
    %52 = arith.maximumf %50, %51 : vector<16x128xf32>
    %cst_49 = arith.constant 0.000000e+00 : bf16
    %53 = vector.broadcast %cst_49 : bf16 to vector<16x128xbf16>
    %c0_50 = arith.constant 0 : index
    %c0_51 = arith.constant 0 : index
    %54 = vector.load %arg14[%c0_50, %c0_51] : memref<32x128xbf16, #tpu.memory_space<vmem>>, vector<16x128xbf16>
    tpu.vector_store %arg14[%c0_50, %c0_51], %53 {strides = array<i32>} : memref<32x128xbf16, #tpu.memory_space<vmem>>, vector<16x128xbf16>,
    %55 = arith.truncf %52 : vector<16x128xf32> to vector<16x128xbf16>
    %c16_52 = arith.constant 16 : index
    %c0_53 = arith.constant 0 : index
    %56 = vector.load %arg14[%c16_52, %c0_53] : memref<32x128xbf16, #tpu.memory_space<vmem>>, vector<16x128xbf16>
    tpu.vector_store %arg14[%c16_52, %c0_53], %55 {strides = array<i32>} : memref<32x128xbf16, #tpu.memory_space<vmem>>, vector<16x128xbf16>,
    %c14_54 = arith.constant 14 : index
    %c0_55 = arith.constant 0 : index
    %57 = vector.load %arg14[%c14_54, %c0_55] : memref<32x128xbf16, #tpu.memory_space<vmem>>, vector<16x128xbf16>
    %c16_56 = arith.constant 16 : index
    %c0_57 = arith.constant 0 : index
    %58 = vector.load %arg14[%c16_56, %c0_57] : memref<32x128xbf16, #tpu.memory_space<vmem>>, vector<16x128xbf16>
    %59 = tpu.concatenate %57, %58 in 1 : vector<16x128xbf16>, vector<16x128xbf16> -> vector<16x256xbf16>
    %c0_58 = arith.constant 0 : index
    %c0_59 = arith.constant 0 : index
    %60 = vector.load %arg11[%c0_58, %c0_59] : memref<1x128xf32, #tpu.memory_space<vmem>>, vector<1x128xf32>
    %c0_60 = arith.constant 0 : index
    %c0_61 = arith.constant 0 : index
    %61 = vector.load %arg10[%c0_60, %c0_61] : memref<256x128xbf16, #tpu.memory_space<vmem>>, vector<256x128xbf16>
    %cst_62 = arith.constant dense<0.000000e+00> : vector<16x128xf32>
    %62 = tpu.matmul %59, %61, %cst_62 {dimension_numbers = #tpu.dot_dimension_numbers<[1], [0], [0], [1], [0, 0, 1, 1], [], []>} : vector<16x256xbf16>, vector<256x128xbf16>, vector<16x128xf32> -> vector<16x128xf32>
    %63 = vector.broadcast %60 : vector<1x128xf32> to vector<16x128xf32>
    %64 = arith.addf %62, %63 : vector<16x128xf32>
    %cst_63 = arith.constant 0.000000e+00 : f32
    %65 = vector.broadcast %cst_63 : f32 to vector<16x128xf32>
    %66 = arith.maximumf %64, %65 : vector<16x128xf32>
    %67 = arith.addf %66, %38 : vector<16x128xf32>
    %cst_64 = arith.constant 0.000000e+00 : f32
    %68 = vector.broadcast %cst_64 : f32 to vector<16x128xf32>
    %69 = arith.maximumf %67, %68 : vector<16x128xf32>
    %c0_65 = arith.constant 0 : index
    %c0_66 = arith.constant 0 : index
    %c0_67 = arith.constant 0 : index
    %70 = vector.load %arg12[%c0_65, %c0_66, %c0_67] : memref<1x16x128xf32, #tpu.memory_space<vmem>>, vector<1x16x128xf32>
    %71 = vector.shape_cast %70 : vector<1x16x128xf32> to vector<16x128xf32>
    %72 = vector.shape_cast %69 : vector<16x128xf32> to vector<1x16x128xf32>
    tpu.vector_store %arg12[%c0_65, %c0_66, %c0_67], %72 {strides = array<i32>} : memref<1x16x128xf32, #tpu.memory_space<vmem>>, vector<1x16x128xf32>,
    return
  }
  func.func @transform_0(%arg0: i32) -> (i32, i32, i32) {
    %c0_i32 = arith.constant 0 : i32
    %c0_i32_0 = arith.constant 0 : i32
    %c0_i32_1 = arith.constant 0 : i32
    return %arg0, %c0_i32, %c0_i32_0 : i32, i32, i32
  }
  func.func @transform_1(%arg0: i32) -> (i32, i32) {
    %c0_i32 = arith.constant 0 : i32
    %c0_i32_0 = arith.constant 0 : i32
    %c0_i32_1 = arith.constant 0 : i32
    return %c0_i32, %c0_i32_0 : i32, i32
  }
  func.func @transform_2(%arg0: i32) -> (i32, i32) {
    %c0_i32 = arith.constant 0 : i32
    %c0_i32_0 = arith.constant 0 : i32
    %c0_i32_1 = arith.constant 0 : i32
    return %c0_i32, %c0_i32_0 : i32, i32
  }
  func.func @transform_3(%arg0: i32) -> (i32, i32) {
    %c0_i32 = arith.constant 0 : i32
    %c0_i32_0 = arith.constant 0 : i32
    %c0_i32_1 = arith.constant 0 : i32
    return %c0_i32, %c0_i32_0 : i32, i32
  }
  func.func @transform_4(%arg0: i32) -> (i32, i32) {
    %c0_i32 = arith.constant 0 : i32
    %c0_i32_0 = arith.constant 0 : i32
    %c0_i32_1 = arith.constant 0 : i32
    return %c0_i32, %c0_i32_0 : i32, i32
  }
  func.func @transform_5(%arg0: i32) -> (i32, i32) {
    %c0_i32 = arith.constant 0 : i32
    %c0_i32_0 = arith.constant 0 : i32
    %c0_i32_1 = arith.constant 0 : i32
    return %c0_i32, %c0_i32_0 : i32, i32
  }
  func.func @transform_6(%arg0: i32) -> (i32, i32) {
    %c0_i32 = arith.constant 0 : i32
    %c0_i32_0 = arith.constant 0 : i32
    %c0_i32_1 = arith.constant 0 : i32
    return %c0_i32, %c0_i32_0 : i32, i32
  }
  func.func @transform_7(%arg0: i32) -> (i32, i32) {
    %c0_i32 = arith.constant 0 : i32
    %c0_i32_0 = arith.constant 0 : i32
    %c0_i32_1 = arith.constant 0 : i32
    return %c0_i32, %c0_i32_0 : i32, i32
  }
  func.func @transform_8(%arg0: i32) -> (i32, i32) {
    %c0_i32 = arith.constant 0 : i32
    %c0_i32_0 = arith.constant 0 : i32
    %c0_i32_1 = arith.constant 0 : i32
    return %c0_i32, %c0_i32_0 : i32, i32
  }
  func.func @transform_9(%arg0: i32) -> (i32, i32) {
    %c0_i32 = arith.constant 0 : i32
    %c0_i32_0 = arith.constant 0 : i32
    %c0_i32_1 = arith.constant 0 : i32
    return %c0_i32, %c0_i32_0 : i32, i32
  }
  func.func @transform_10(%arg0: i32) -> (i32, i32) {
    %c0_i32 = arith.constant 0 : i32
    %c0_i32_0 = arith.constant 0 : i32
    %c0_i32_1 = arith.constant 0 : i32
    return %c0_i32, %c0_i32_0 : i32, i32
  }
  func.func @transform_11(%arg0: i32) -> (i32, i32, i32) {
    %c0_i32 = arith.constant 0 : i32
    %c0_i32_0 = arith.constant 0 : i32
    %c0_i32_1 = arith.constant 0 : i32
    return %arg0, %c0_i32, %c0_i32_0 : i32, i32, i32
  }
}

</mosaic_0001>

<llo_original>
// kernel: forward.1
$region0: #{forward.1}
  #allocation0 [shape = 'u32[]', space=smem, size = 0x4, offset = 0x4, fixed_abs, tag = 'smem constant byte address 0x4 - core index']
  #allocation1 [shape = 'u32[144,128]{1,0:T(1,128)}', space=vmem, size = 0x12000, scoped, tag = 'internal scratch']
  #allocation2 [shape = 'bf16[32,128]{1,0:T(16,128)(2,1)}', space=vmem, size = 0x2000, scoped, tag = 'scratch operand']
  #allocation3 [shape = 'bf16[32,128]{1,0:T(16,128)(2,1)}', space=vmem, size = 0x2000, scoped, tag = 'scratch operand']
  %s0 = inlined_call_operand.vmem [shape: f32[2,16,128], index: 0, kind: input, shape index: {}]
  %s1 = inlined_call_operand.vmem [shape: bf16[256,128], index: 1, kind: input, shape index: {}]
  %s2 = inlined_call_operand.vmem [shape: f32[1,128], index: 2, kind: input, shape index: {}]
  %s3 = inlined_call_operand.vmem [shape: bf16[256,128], index: 3, kind: input, shape index: {}]
  %s4 = inlined_call_operand.vmem [shape: f32[1,128], index: 4, kind: input, shape index: {}]
  %s5 = inlined_call_operand.vmem [shape: bf16[128,128], index: 5, kind: input, shape index: {}]
  %s6 = inlined_call_operand.vmem [shape: f32[1,128], index: 6, kind: input, shape index: {}]
  %s7 = inlined_call_operand.vmem [shape: bf16[256,128], index: 7, kind: input, shape index: {}]
  %s8 = inlined_call_operand.vmem [shape: f32[1,128], index: 8, kind: input, shape index: {}]
  %s9 = inlined_call_operand.vmem [shape: bf16[256,128], index: 9, kind: input, shape index: {}]
  %s10 = inlined_call_operand.vmem [shape: f32[1,128], index: 10, kind: input, shape index: {}]
  %s11 = inlined_call_operand.vmem [shape: f32[2,16,128], index: 11, kind: output, shape index: {}]
  %s12 = sld [smem:[#allocation0]]
  $region77: #{forward.1} parent=0
    _
  %s14 = ssub.s32 1, %s12
  %s15 = scalar_select 0, %s14, %s12
  loop: start=0, step=1, limit=4
  $region2: #{forward.1} parent=0 // loop_pre_header
    _
  $region3: #{forward.1} parent=0 // loop_header
    %s17 = sphi 0, %s21
    %p18 = scmp.ge.s32.totalorder %s17, 4
    %s27 = sphi 0, %s29
    %s30 = sphi 0, %s27
    %s31 = sphi 0, %s30
    %s47 = sphi 0, %s31
    %s51 = sphi 0, %s51
    %s53 = sphi 0, %s51
    %s54 = sphi 0, %s53
    %s68 = sphi 0, %s54
    %s72 = sphi 0, %s72
    %s74 = sphi 0, %s72
    %s75 = sphi 0, %s74
    %s89 = sphi 0, %s75
    %s93 = sphi 0, %s93
    %s95 = sphi 0, %s93
    %s96 = sphi 0, %s95
    %s110 = sphi 0, %s96
    %s114 = sphi 0, %s114
    %s116 = sphi 0, %s114
    %s117 = sphi 0, %s116
    %s131 = sphi 0, %s117
    %s135 = sphi 0, %s135
    %s137 = sphi 0, %s135
    %s138 = sphi 0, %s137
    %s152 = sphi 0, %s138
    %s156 = sphi 0, %s156
    %s158 = sphi 0, %s156
    %s159 = sphi 0, %s158
    %s173 = sphi 0, %s159
    %s177 = sphi 0, %s177
    %s179 = sphi 0, %s177
    %s180 = sphi 0, %s179
    %s194 = sphi 0, %s180
    %s198 = sphi 0, %s198
    %s200 = sphi 0, %s198
    %s201 = sphi 0, %s200
    %s215 = sphi 0, %s201
    %s219 = sphi 0, %s219
    %s221 = sphi 0, %s219
    %s222 = sphi 0, %s221
    %s236 = sphi 0, %s222
    %s240 = sphi 0, %s240
    %s242 = sphi 0, %s240
    %s243 = sphi 0, %s242
    %s257 = sphi 0, %s243
    %s263 = sphi 0, %s265
    %s266 = sphi 0, %s263
    %s267 = sphi 0, %s266
    %s283 = sphi 0, %s267
  $region4: #{forward.1} parent=0 // loop_header_branch
    %20 = sbr.rel (%p18) target = $region8
  $region5: #{forward.1} parent=0 // loop_body
    %s22 = ssub.s32 %s17, 1
    %s23 = ssub.s32 %s17, 2
    %s24 = sadd.s32 %s17, 1
    %s25 = ssub.s32 %s17, %s24
    %p26 = scmp.eq.s32.totalorder %s25, 0
    %s28 = sadd.s32 %s27, 1
    %s29 = scalar_select %p26, %s27, %s28
    %p32 = pneg %p26
    %p33 = scmp.eq.s32.totalorder %s17, 1
    %p34 = por %p32, %p33
    %p35 = scmp.ne.s32.totalorder %s27, %s30
    %p36 = scmp.eq.s32.totalorder %s17, 0
    %p37 = por %p35, %p36
    %p38 = scmp.ne.s32.totalorder %s27, %s30
    %p39 = scmp.eq.s32.totalorder %s22, 1
    %p40 = por %p38, %p39
    %p41 = scmp.ne.s32.totalorder %s30, %s31
    %p42 = scmp.eq.s32.totalorder %s22, 0
    %p43 = por %p41, %p42
    %p44 = scmp.ne.s32.totalorder %s30, %s31
    %p45 = scmp.eq.s32.totalorder %s23, 1
    %p46 = por %p44, %p45
    %p48 = scmp.ne.s32.totalorder %s31, %s47
    %p49 = scmp.eq.s32.totalorder %s23, 0
    %p50 = por %p48, %p49
    %s52 = sadd.s32 %s51, 1
    %p55 = scmp.eq.s32.totalorder %s17, 1
    %p56 = scmp.ne.s32.totalorder %s51, %s53
    %p57 = scmp.eq.s32.totalorder %s17, 0
    %p58 = por %p56, %p57
    %p59 = scmp.ne.s32.totalorder %s51, %s53
    %p60 = scmp.eq.s32.totalorder %s22, 1
    %p61 = por %p59, %p60
    %p62 = scmp.ne.s32.totalorder %s53, %s54
    %p63 = scmp.eq.s32.totalorder %s22, 0
    %p64 = por %p62, %p63
    %p65 = scmp.ne.s32.totalorder %s53, %s54
    %p66 = scmp.eq.s32.totalorder %s23, 1
    %p67 = por %p65, %p66
    %p69 = scmp.ne.s32.totalorder %s54, %s68
    %p70 = scmp.eq.s32.totalorder %s23, 0
    %p71 = por %p69, %p70
    %s73 = sadd.s32 %s72, 1
    %p76 = scmp.eq.s32.totalorder %s17, 1
    %p77 = scmp.ne.s32.totalorder %s72, %s74
    %p78 = scmp.eq.s32.totalorder %s17, 0
    %p79 = por %p77, %p78
    %p80 = scmp.ne.s32.totalorder %s72, %s74
    %p81 = scmp.eq.s32.totalorder %s22, 1
    %p82 = por %p80, %p81
    %p83 = scmp.ne.s32.totalorder %s74, %s75
    %p84 = scmp.eq.s32.totalorder %s22, 0
    %p85 = por %p83, %p84
    %p86 = scmp.ne.s32.totalorder %s74, %s75
    %p87 = scmp.eq.s32.totalorder %s23, 1
    %p88 = por %p86, %p87
    %p90 = scmp.ne.s32.totalorder %s75, %s89
    %p91 = scmp.eq.s32.totalorder %s23, 0
    %p92 = por %p90, %p91
    %s94 = sadd.s32 %s93, 1
    %p97 = scmp.eq.s32.totalorder %s17, 1
    %p98 = scmp.ne.s32.totalorder %s93, %s95
    %p99 = scmp.eq.s32.totalorder %s17, 0
    %p100 = por %p98, %p99
    %p101 = scmp.ne.s32.totalorder %s93, %s95
    %p102 = scmp.eq.s32.totalorder %s22, 1
    %p103 = por %p101, %p102
    %p104 = scmp.ne.s32.totalorder %s95, %s96
    %p105 = scmp.eq.s32.totalorder %s22, 0
    %p106 = por %p104, %p105
    %p107 = scmp.ne.s32.totalorder %s95, %s96
    %p108 = scmp.eq.s32.totalorder %s23, 1
    %p109 = por %p107, %p108
    %p111 = scmp.ne.s32.totalorder %s96, %s110
    %p112 = scmp.eq.s32.totalorder %s23, 0
    %p113 = por %p111, %p112
    %s115 = sadd.s32 %s114, 1
    %p118 = scmp.eq.s32.totalorder %s17, 1
    %p119 = scmp.ne.s32.totalorder %s114, %s116
    %p120 = scmp.eq.s32.totalorder %s17, 0
    %p121 = por %p119, %p120
    %p122 = scmp.ne.s32.totalorder %s114, %s116
    %p123 = scmp.eq.s32.totalorder %s22, 1
    %p124 = por %p122, %p123
    %p125 = scmp.ne.s32.totalorder %s116, %s117
    %p126 = scmp.eq.s32.totalorder %s22, 0
    %p127 = por %p125, %p126
    %p128 = scmp.ne.s32.totalorder %s116, %s117
    %p129 = scmp.eq.s32.totalorder %s23, 1
    %p130 = por %p128, %p129
    %p132 = scmp.ne.s32.totalorder %s117, %s131
    %p133 = scmp.eq.s32.totalorder %s23, 0
    %p134 = por %p132, %p133
    %s136 = sadd.s32 %s135, 1
    %p139 = scmp.eq.s32.totalorder %s17, 1
    %p140 = scmp.ne.s32.totalorder %s135, %s137
    %p141 = scmp.eq.s32.totalorder %s17, 0
    %p142 = por %p140, %p141
    %p143 = scmp.ne.s32.totalorder %s135, %s137
    %p144 = scmp.eq.s32.totalorder %s22, 1
    %p145 = por %p143, %p144
    %p146 = scmp.ne.s32.totalorder %s137, %s138
    %p147 = scmp.eq.s32.totalorder %s22, 0
    %p148 = por %p146, %p147
    %p149 = scmp.ne.s32.totalorder %s137, %s138
    %p150 = scmp.eq.s32.totalorder %s23, 1
    %p151 = por %p149, %p150
    %p153 = scmp.ne.s32.totalorder %s138, %s152
    %p154 = scmp.eq.s32.totalorder %s23, 0
    %p155 = por %p153, %p154
    %s157 = sadd.s32 %s156, 1
    %p160 = scmp.eq.s32.totalorder %s17, 1
    %p161 = scmp.ne.s32.totalorder %s156, %s158
    %p162 = scmp.eq.s32.totalorder %s17, 0
    %p163 = por %p161, %p162
    %p164 = scmp.ne.s32.totalorder %s156, %s158
    %p165 = scmp.eq.s32.totalorder %s22, 1
    %p166 = por %p164, %p165
    %p167 = scmp.ne.s32.totalorder %s158, %s159
    %p168 = scmp.eq.s32.totalorder %s22, 0
    %p169 = por %p167, %p168
    %p170 = scmp.ne.s32.totalorder %s158, %s159
    %p171 = scmp.eq.s32.totalorder %s23, 1
    %p172 = por %p170, %p171
    %p174 = scmp.ne.s32.totalorder %s159, %s173
    %p175 = scmp.eq.s32.totalorder %s23, 0
    %p176 = por %p174, %p175
    %s178 = sadd.s32 %s177, 1
    %p181 = scmp.eq.s32.totalorder %s17, 1
    %p182 = scmp.ne.s32.totalorder %s177, %s179
    %p183 = scmp.eq.s32.totalorder %s17, 0
    %p184 = por %p182, %p183
    %p185 = scmp.ne.s32.totalorder %s177, %s179
    %p186 = scmp.eq.s32.totalorder %s22, 1
    %p187 = por %p185, %p186
    %p188 = scmp.ne.s32.totalorder %s179, %s180
    %p189 = scmp.eq.s32.totalorder %s22, 0
    %p190 = por %p188, %p189
    %p191 = scmp.ne.s32.totalorder %s179, %s180
    %p192 = scmp.eq.s32.totalorder %s23, 1
    %p193 = por %p191, %p192
    %p195 = scmp.ne.s32.totalorder %s180, %s194
    %p196 = scmp.eq.s32.totalorder %s23, 0
    %p197 = por %p195, %p196
    %s199 = sadd.s32 %s198, 1
    %p202 = scmp.eq.s32.totalorder %s17, 1
    %p203 = scmp.ne.s32.totalorder %s198, %s200
    %p204 = scmp.eq.s32.totalorder %s17, 0
    %p205 = por %p203, %p204
    %p206 = scmp.ne.s32.totalorder %s198, %s200
    %p207 = scmp.eq.s32.totalorder %s22, 1
    %p208 = por %p206, %p207
    %p209 = scmp.ne.s32.totalorder %s200, %s201
    %p210 = scmp.eq.s32.totalorder %s22, 0
    %p211 = por %p209, %p210
    %p212 = scmp.ne.s32.totalorder %s200, %s201
    %p213 = scmp.eq.s32.totalorder %s23, 1
    %p214 = por %p212, %p213
    %p216 = scmp.ne.s32.totalorder %s201, %s215
    %p217 = scmp.eq.s32.totalorder %s23, 0
    %p218 = por %p216, %p217
    %s220 = sadd.s32 %s219, 1
    %p223 = scmp.eq.s32.totalorder %s17, 1
    %p224 = scmp.ne.s32.totalorder %s219, %s221
    %p225 = scmp.eq.s32.totalorder %s17, 0
    %p226 = por %p224, %p225
    %p227 = scmp.ne.s32.totalorder %s219, %s221
    %p228 = scmp.eq.s32.totalorder %s22, 1
    %p229 = por %p227, %p228
    %p230 = scmp.ne.s32.totalorder %s221, %s222
    %p231 = scmp.eq.s32.totalorder %s22, 0
    %p232 = por %p230, %p231
    %p233 = scmp.ne.s32.totalorder %s221, %s222
    %p234 = scmp.eq.s32.totalorder %s23, 1
    %p235 = por %p233, %p234
    %p237 = scmp.ne.s32.totalorder %s222, %s236
    %p238 = scmp.eq.s32.totalorder %s23, 0
    %p239 = por %p237, %p238
    %s241 = sadd.s32 %s240, 1
    %p244 = scmp.eq.s32.totalorder %s17, 1
    %p245 = scmp.ne.s32.totalorder %s240, %s242
    %p246 = scmp.eq.s32.totalorder %s17, 0
    %p247 = por %p245, %p246
    %p248 = scmp.ne.s32.totalorder %s240, %s242
    %p249 = scmp.eq.s32.totalorder %s22, 1
    %p250 = por %p248, %p249
    %p251 = scmp.ne.s32.totalorder %s242, %s243
    %p252 = scmp.eq.s32.totalorder %s22, 0
    %p253 = por %p251, %p252
    %p254 = scmp.ne.s32.totalorder %s242, %s243
    %p255 = scmp.eq.s32.totalorder %s23, 1
    %p256 = por %p254, %p255
    %p258 = scmp.ne.s32.totalorder %s243, %s257
    %p259 = scmp.eq.s32.totalorder %s23, 0
    %p260 = por %p258, %p259
    %s261 = ssub.s32 %s17, %s24
    %p262 = scmp.eq.s32.totalorder %s261, 0
    %s264 = sadd.s32 %s263, 1
    %s265 = scalar_select %p262, %s263, %s264
    %p268 = pneg %p262
    %p269 = scmp.eq.s32.totalorder %s17, 1
    %p270 = por %p268, %p269
    %p271 = scmp.ne.s32.totalorder %s263, %s266
    %p272 = scmp.eq.s32.totalorder %s17, 0
    %p273 = por %p271, %p272
    %p274 = scmp.ne.s32.totalorder %s263, %s266
    %p275 = scmp.eq.s32.totalorder %s22, 1
    %p276 = por %p274, %p275
    %p277 = scmp.ne.s32.totalorder %s266, %s267
    %p278 = scmp.eq.s32.totalorder %s22, 0
    %p279 = por %p277, %p278
    %p280 = scmp.ne.s32.totalorder %s266, %s267
    %p281 = scmp.eq.s32.totalorder %s23, 1
    %p282 = por %p280, %p281
    %p284 = scmp.ne.s32.totalorder %s267, %s283
    %p285 = scmp.eq.s32.totalorder %s23, 0
    %p286 = por %p284, %p285
    %p287 = scmp.le.s32.totalorder 1, %s17
    %p288 = scmp.lt.s32.totalorder %s17, 3
    %p289 = pnand %p287, %p288
    %p290 = pneg %p289
    // Predicated region
    $region9: #{forward.1} parent=5 // pred_check
      _
    $region10: #{forward.1} parent=5 // pred_check_branch
      %292 = sbr.rel (%p289) target = $region12
    $region11: #{forward.1} parent=5 // pred_region
      %s293 = ssub.s32 %s17, 1
      // Predicated region
      $region13: #{forward.1} parent=11 // pred_check
        %p294 = pneg %p64
      $region14: #{forward.1} parent=11 // pred_check_branch
        %296 = sbr.rel (%p294) target = $region16
      $region15: #{forward.1} parent=11 // pred_region
        _
      $region16: #{forward.1} parent=11 // pred_fallthru
        _
      // Predicated region
      $region17: #{forward.1} parent=11 // pred_check
        %p297 = pneg %p85
      $region18: #{forward.1} parent=11 // pred_check_branch
        %299 = sbr.rel (%p297) target = $region20
      $region19: #{forward.1} parent=11 // pred_region
        _
      $region20: #{forward.1} parent=11 // pred_fallthru
        _
      // Predicated region
      $region21: #{forward.1} parent=11 // pred_check
        %p300 = pneg %p106
      $region22: #{forward.1} parent=11 // pred_check_branch
        %302 = sbr.rel (%p300) target = $region24
      $region23: #{forward.1} parent=11 // pred_region
        _
      $region24: #{forward.1} parent=11 // pred_fallthru
        _
      // Predicated region
      $region25: #{forward.1} parent=11 // pred_check
        %p303 = pneg %p127
      $region26: #{forward.1} parent=11 // pred_check_branch
        %305 = sbr.rel (%p303) target = $region28
      $region27: #{forward.1} parent=11 // pred_region
        _
      $region28: #{forward.1} parent=11 // pred_fallthru
        _
      // Predicated region
      $region29: #{forward.1} parent=11 // pred_check
        %p306 = pneg %p148
      $region30: #{forward.1} parent=11 // pred_check_branch
        %308 = sbr.rel (%p306) target = $region32
      $region31: #{forward.1} parent=11 // pred_region
        _
      $region32: #{forward.1} parent=11 // pred_fallthru
        _
      // Predicated region
      $region33: #{forward.1} parent=11 // pred_check
        %p309 = pneg %p169
      $region34: #{forward.1} parent=11 // pred_check_branch
        %311 = sbr.rel (%p309) target = $region36
      $region35: #{forward.1} parent=11 // pred_region
        _
      $region36: #{forward.1} parent=11 // pred_fallthru
        _
      // Predicated region
      $region37: #{forward.1} parent=11 // pred_check
        %p312 = pneg %p190
      $region38: #{forward.1} parent=11 // pred_check_branch
        %314 = sbr.rel (%p312) target = $region40
      $region39: #{forward.1} parent=11 // pred_region
        _
      $region40: #{forward.1} parent=11 // pred_fallthru
        _
      // Predicated region
      $region41: #{forward.1} parent=11 // pred_check
        %p315 = pneg %p211
      $region42: #{forward.1} parent=11 // pred_check_branch
        %317 = sbr.rel (%p315) target = $region44
      $region43: #{forward.1} parent=11 // pred_region
        _
      $region44: #{forward.1} parent=11 // pred_fallthru
        _
      // Predicated region
      $region45: #{forward.1} parent=11 // pred_check
        %p318 = pneg %p232
      $region46: #{forward.1} parent=11 // pred_check_branch
        %320 = sbr.rel (%p318) target = $region48
      $region47: #{forward.1} parent=11 // pred_region
        _
      $region48: #{forward.1} parent=11 // pred_fallthru
        _
      // Predicated region
      $region49: #{forward.1} parent=11 // pred_check
        %p321 = pneg %p253
      $region50: #{forward.1} parent=11 // pred_check_branch
        %323 = sbr.rel (%p321) target = $region52
      $region51: #{forward.1} parent=11 // pred_region
        _
      $region52: #{forward.1} parent=11 // pred_fallthru
        _
    $region12: #{forward.1} parent=5 // pred_fallthru
      _
    %p324 = scmp.lt.s32.totalorder %s17, 2
    // Predicated region
    $region53: #{forward.1} parent=5 // pred_check
      %p325 = pneg %p324
    $region54: #{forward.1} parent=5 // pred_check_branch
      %327 = sbr.rel (%p325) target = $region56
    $region55: #{forward.1} parent=5 // pred_region
      // Predicated region
      $region57: #{forward.1} parent=55 // pred_check
        %p328 = pneg %p37
      $region58: #{forward.1} parent=55 // pred_check_branch
        %330 = sbr.rel (%p328) target = $region60
      $region59: #{forward.1} parent=55 // pred_region
        %p331 = scmp.lt.s32.totalorder %s17, 1
        %s332 = scalar_select %p331, %s17, 1
        %s333 = smul.addr %s332, 2
        %s334 = smul.addr %s333, 8
        %s335 = scalar_lea.vmem %s0, %s334
      $region60: #{forward.1} parent=55 // pred_fallthru
        _
    $region56: #{forward.1} parent=5 // pred_fallthru
      _
    %p336 = scmp.le.s32.totalorder 1, %s17
    %p337 = scmp.lt.s32.totalorder %s17, 3
    %p338 = pnand %p336, %p337
    %p339 = pneg %p338
    // Predicated region
    $region61: #{forward.1} parent=5 // pred_check
      _
    $region62: #{forward.1} parent=5 // pred_check_branch
      %341 = sbr.rel (%p338) target = $region64
    $region63: #{forward.1} parent=5 // pred_region
      %s342 = ssub.s32 %s17, 1
      %p343 = scmp.lt.s32.totalorder %s22, 1
      %s344 = scalar_select %p343, %s22, 1
      %s345 = smul.addr %s344, 2
      %s346 = smul.addr %s345, 8
      %s347 = scalar_lea.vmem %s0, %s346
      %p348 = pneg %p43
      %p349 = pneg %p40
      %p350 = pneg %p64
      %p351 = pneg %p61
      %p352 = pneg %p85
      %p353 = pneg %p82
      %p354 = pneg %p106
      %p355 = pneg %p103
      %p356 = pneg %p127
      %p357 = pneg %p124
      %p358 = pneg %p148
      %p359 = pneg %p145
      %p360 = pneg %p169
      %p361 = pneg %p166
      %p362 = pneg %p190
      %p363 = pneg %p187
      %p364 = pneg %p211
      %p365 = pneg %p208
      %p366 = pneg %p232
      %p367 = pneg %p229
      %p368 = pneg %p253
      %p369 = pneg %p250
      %p370 = pneg %p279
      %p371 = pneg %p276
      %p372 = scmp.lt.s32.totalorder %s22, 1
      %s373 = scalar_select %p372, %s22, 1
      %s374 = smul.addr %s373, 2
      %s375 = smul.addr %s374, 8
      %s376 = scalar_lea.vmem %s11, %s375
      %p377 = scmp.lt.s32.totalorder %s22, 1
      %s378 = scalar_select %p377, %s22, 1
      %s379 = smul.addr %s378, 2
      %s380 = smul.addr %s379, 8
      %s381 = scalar_lea.vmem %s0, %s380
      %p382 = scmp.lt.s32.totalorder %s22, 1
      %s383 = scalar_select %p382, %s22, 1
      %s384 = smul.addr %s383, 2
      %s385 = smul.addr %s384, 8
      %s386 = scalar_lea.vmem %s11, %s385
      %v388 = vld [vmem:[%s381] sm:$0xff]
      %v389 = vld [vmem:[%s381 + $0x8] sm:$0xff]
      %390 = vst [vmem:[#allocation2] sm:$0xff] 0
      %v391 = vpack.c.bf16 %v389, %v388
      %392 = vst [vmem:[#allocation2 + $0x8] sm:$0xff] %v391
      %v393 = vld [vmem:[#allocation2] sm:$0x80]
      %v394 = vld [vmem:[#allocation2 + $0x8] sm:$0xff]
      %v396 = vshll.u32 %v394, 16
      %v398 = vrot.slane %v396, 1
      %v399 = vshrl.u32 %v394, 16
      %v401 = vor.u32 %v399, %v398
      %v402 = vld [vmem:[%s2] sm:$0x1]
      %v403 = vld [vmem:[%s1] sm:$0xf]
      %v404 = vld [vmem:[%s1 + $0x4] sm:$0xf]
      %v405 = vld [vmem:[%s1 + $0x8] sm:$0xf]
      %v406 = vld [vmem:[%s1 + $0xc] sm:$0xf]
      %v407 = vld [vmem:[%s1 + $0x10] sm:$0xf]
      %v408 = vld [vmem:[%s1 + $0x14] sm:$0xf]
      %v409 = vld [vmem:[%s1 + $0x18] sm:$0xf]
      %v410 = vld [vmem:[%s1 + $0x1c] sm:$0xf]
      %v411 = vld [vmem:[%s1 + $0x20] sm:$0xf]
      %v412 = vld [vmem:[%s1 + $0x24] sm:$0xf]
      %v413 = vld [vmem:[%s1 + $0x28] sm:$0xf]
      %v414 = vld [vmem:[%s1 + $0x2c] sm:$0xf]
      %v415 = vld [vmem:[%s1 + $0x30] sm:$0xf]
      %v416 = vld [vmem:[%s1 + $0x34] sm:$0xf]
      %v417 = vld [vmem:[%s1 + $0x38] sm:$0xf]
      %v418 = vld [vmem:[%s1 + $0x3c] sm:$0xf]
      %v419 = vld [vmem:[%s1 + $0x40] sm:$0xf]
      %v420 = vld [vmem:[%s1 + $0x44] sm:$0xf]
      %v421 = vld [vmem:[%s1 + $0x48] sm:$0xf]
      %v422 = vld [vmem:[%s1 + $0x4c] sm:$0xf]
      %v423 = vld [vmem:[%s1 + $0x50] sm:$0xf]
      %v424 = vld [vmem:[%s1 + $0x54] sm:$0xf]
      %v425 = vld [vmem:[%s1 + $0x58] sm:$0xf]
      %v426 = vld [vmem:[%s1 + $0x5c] sm:$0xf]
      %v427 = vld [vmem:[%s1 + $0x60] sm:$0xf]
      %v428 = vld [vmem:[%s1 + $0x64] sm:$0xf]
      %v429 = vld [vmem:[%s1 + $0x68] sm:$0xf]
      %v430 = vld [vmem:[%s1 + $0x6c] sm:$0xf]
      %v431 = vld [vmem:[%s1 + $0x70] sm:$0xf]
      %v432 = vld [vmem:[%s1 + $0x74] sm:$0xf]
      %v433 = vld [vmem:[%s1 + $0x78] sm:$0xf]
      %v434 = vld [vmem:[%s1 + $0x7c] sm:$0xf]
      %v436 = vlaneseq
      %v437 = vshrl.u32 %v436, 7
      %v438 = vsub.s32 0, %v437
      %v439 = vrot.slane %v402, %v438
      %vm441 = vsmask.f32 256
      %v443 = vshrl.u32 %v393, 16
      %v445 = vrot.slane %v443, 7
      %v446 = vrot.slane %v399, 7
      %v447 = vor.u32 %v446, %v396
      %v448 = vsel %vm441, %v445, %v447
      %v450 = vshrl.u32 %v398, 16
      %v452 = vrot.slane %v450, 7
      %v454 = vshrl.u32 %v401, 16
      %v456 = vrot.slane %v454, 7
      %v457 = vshll.u32 %v401, 16
      %v459 = vor.u32 %v456, %v457
      %v460 = vsel %vm441, %v452, %v459
      %v495 = vunpack.c.l.b16 %v403
      %v496 = vunpack.c.l.b16 %v404
      %v497 = vunpack.c.l.b16 %v405
      %v498 = vunpack.c.l.b16 %v406
      %v499 = vunpack.c.l.b16 %v407
      %v500 = vunpack.c.l.b16 %v408
      %v501 = vunpack.c.l.b16 %v409
      %v502 = vunpack.c.l.b16 %v410
      %v503 = vunpack.c.l.b16 %v411
      %v504 = vunpack.c.l.b16 %v412
      %v505 = vunpack.c.l.b16 %v413
      %v506 = vunpack.c.l.b16 %v414
      %v507 = vunpack.c.l.b16 %v415
      %v508 = vunpack.c.l.b16 %v416
      %v509 = vunpack.c.l.b16 %v417
      %v510 = vunpack.c.l.b16 %v418
      %v511 = vunpack.c.l.b16 %v419
      %v512 = vunpack.c.l.b16 %v420
      %v513 = vunpack.c.l.b16 %v421
      %v514 = vunpack.c.l.b16 %v422
      %v515 = vunpack.c.l.b16 %v423
      %v516 = vunpack.c.l.b16 %v424
      %v517 = vunpack.c.l.b16 %v425
      %v518 = vunpack.c.l.b16 %v426
      %v519 = vunpack.c.l.b16 %v427
      %v520 = vunpack.c.l.b16 %v428
      %v521 = vunpack.c.l.b16 %v429
      %v522 = vunpack.c.l.b16 %v430
      %v523 = vunpack.c.l.b16 %v431
      %v524 = vunpack.c.l.b16 %v432
      %v525 = vunpack.c.l.b16 %v433
      %v526 = vunpack.c.l.b16 %v434
      %v527 = vpack.c.b16 %v496, %v495
      %v528 = vpack.c.b16 %v498, %v497
      %v529 = vpack.c.b16 %v500, %v499
      %v530 = vpack.c.b16 %v502, %v501
      %v531 = vpack.c.b16 %v504, %v503
      %v532 = vpack.c.b16 %v506, %v505
      %v533 = vpack.c.b16 %v508, %v507
      %v534 = vpack.c.b16 %v510, %v509
      %v535 = vpack.c.b16 %v512, %v511
      %v536 = vpack.c.b16 %v514, %v513
      %v537 = vpack.c.b16 %v516, %v515
      %v538 = vpack.c.b16 %v518, %v517
      %v539 = vpack.c.b16 %v520, %v519
      %v540 = vpack.c.b16 %v522, %v521
      %v541 = vpack.c.b16 %v524, %v523
      %v542 = vpack.c.b16 %v526, %v525
      %559 = vmatprep.subr.bf16.mxu0 0
      %560 = vmatpush1.bf16.msra.mxu0 %v527
      %561 = vmatprep.subr.bf16.mxu0 0
      %562 = vmatpush1.bf16.msra.mxu0 %v528
      %563 = vmatprep.subr.bf16.mxu0 0
      %564 = vmatpush1.bf16.msra.mxu0 %v529
      %565 = vmatprep.subr.bf16.mxu0 0
      %566 = vmatpush1.bf16.msra.mxu0 %v530
      %567 = vmatprep.subr.bf16.mxu0 0
      %568 = vmatpush1.bf16.msra.mxu0 %v531
      %569 = vmatprep.subr.bf16.mxu0 0
      %570 = vmatpush1.bf16.msra.mxu0 %v532
      %571 = vmatprep.subr.bf16.mxu0 0
      %572 = vmatpush1.bf16.msra.mxu0 %v533
      %573 = vmatprep.subr.bf16.mxu0 0
      %574 = vmatpush1.bf16.msra.mxu0 %v534
      %575 = vmatprep.subr.bf16.mxu0 0
      %576 = vmatpush1.bf16.msra.mxu0 %v535
      %577 = vmatprep.subr.bf16.mxu0 0
      %578 = vmatpush1.bf16.msra.mxu0 %v536
      %579 = vmatprep.subr.bf16.mxu0 0
      %580 = vmatpush1.bf16.msra.mxu0 %v537
      %581 = vmatprep.subr.bf16.mxu0 0
      %582 = vmatpush1.bf16.msra.mxu0 %v538
      %583 = vmatprep.subr.bf16.mxu0 0
      %584 = vmatpush1.bf16.msra.mxu0 %v539
      %585 = vmatprep.subr.bf16.mxu0 0
      %586 = vmatpush1.bf16.msra.mxu0 %v540
      %587 = vmatprep.subr.bf16.mxu0 0
      %588 = vmatpush1.bf16.msra.mxu0 %v541
      %589 = vmatprep.subr.bf16.mxu0 0
      %590 = vmatpush1.bf16.msra.mxu0 %v542
      %591 = vmatprep.mubr.bf16.mxu0 %v460
      %592 = vmatmul.mubr.bf16.gmra.mrb[0].mxu0 %v448
      %v593 = vpop.f32.mrb[0].mxu0
      %v594 = vadd.f32 %v439, %v593
      %v595 = vpop.f32.mrb[0].mxu0
      %v596 = vpop.f32.mrb[0].mxu0
      %v597 = vadd.f32 %v439, %v596
      %v598 = vpop.f32.mrb[0].mxu0
      %599 = vdwg.mxu0
      %v600 = vmax.f32 %v594, 0.0
      %v601 = vmax.f32 %v597, 0.0
      %602 = vst [vmem:[#allocation3] sm:$0xff] 0
      %v603 = vpack.c.bf16 %v601, %v600
      %604 = vst [vmem:[#allocation3 + $0x8] sm:$0xff] %v603
      %v605 = vld [vmem:[#allocation3] sm:$0x80]
      %v606 = vld [vmem:[#allocation3 + $0x8] sm:$0xff]
      %v608 = vshll.u32 %v606, 16
      %v610 = vrot.slane %v608, 1
      %v611 = vshrl.u32 %v606, 16
      %v613 = vor.u32 %v611, %v610
      %v614 = vld [vmem:[%s4] sm:$0x1]
      %v615 = vld [vmem:[%s3] sm:$0xf]
      %v616 = vld [vmem:[%s3 + $0x4] sm:$0xf]
      %v617 = vld [vmem:[%s3 + $0x8] sm:$0xf]
      %v618 = vld [vmem:[%s3 + $0xc] sm:$0xf]
      %v619 = vld [vmem:[%s3 + $0x10] sm:$0xf]
      %v620 = vld [vmem:[%s3 + $0x14] sm:$0xf]
      %v621 = vld [vmem:[%s3 + $0x18] sm:$0xf]
      %v622 = vld [vmem:[%s3 + $0x1c] sm:$0xf]
      %v623 = vld [vmem:[%s3 + $0x20] sm:$0xf]
      %v624 = vld [vmem:[%s3 + $0x24] sm:$0xf]
      %v625 = vld [vmem:[%s3 + $0x28] sm:$0xf]
      %v626 = vld [vmem:[%s3 + $0x2c] sm:$0xf]
      %v627 = vld [vmem:[%s3 + $0x30] sm:$0xf]
      %v628 = vld [vmem:[%s3 + $0x34] sm:$0xf]
      %v629 = vld [vmem:[%s3 + $0x38] sm:$0xf]
      %v630 = vld [vmem:[%s3 + $0x3c] sm:$0xf]
      %v631 = vld [vmem:[%s3 + $0x40] sm:$0xf]
      %v632 = vld [vmem:[%s3 + $0x44] sm:$0xf]
      %v633 = vld [vmem:[%s3 + $0x48] sm:$0xf]
      %v634 = vld [vmem:[%s3 + $0x4c] sm:$0xf]
      %v635 = vld [vmem:[%s3 + $0x50] sm:$0xf]
      %v636 = vld [vmem:[%s3 + $0x54] sm:$0xf]
      %v637 = vld [vmem:[%s3 + $0x58] sm:$0xf]
      %v638 = vld [vmem:[%s3 + $0x5c] sm:$0xf]
      %v639 = vld [vmem:[%s3 + $0x60] sm:$0xf]
      %v640 = vld [vmem:[%s3 + $0x64] sm:$0xf]
      %v641 = vld [vmem:[%s3 + $0x68] sm:$0xf]
      %v642 = vld [vmem:[%s3 + $0x6c] sm:$0xf]
      %v643 = vld [vmem:[%s3 + $0x70] sm:$0xf]
      %v644 = vld [vmem:[%s3 + $0x74] sm:$0xf]
      %v645 = vld [vmem:[%s3 + $0x78] sm:$0xf]
      %v646 = vld [vmem:[%s3 + $0x7c] sm:$0xf]
      %v648 = vlaneseq
      %v649 = vshrl.u32 %v648, 7
      %v650 = vsub.s32 0, %v649
      %v651 = vrot.slane %v614, %v650
      %v654 = vshrl.u32 %v605, 16
      %v656 = vrot.slane %v654, 7
      %v657 = vrot.slane %v611, 7
      %v658 = vor.u32 %v657, %v608
      %v659 = vsel %vm441, %v656, %v658
      %v661 = vshrl.u32 %v610, 16
      %v663 = vrot.slane %v661, 7
      %v665 = vshrl.u32 %v613, 16
      %v667 = vrot.slane %v665, 7
      %v668 = vshll.u32 %v613, 16
      %v670 = vor.u32 %v667, %v668
      %v671 = vsel %vm441, %v663, %v670
      %v706 = vunpack.c.l.b16 %v615
      %v707 = vunpack.c.l.b16 %v616
      %v708 = vunpack.c.l.b16 %v617
      %v709 = vunpack.c.l.b16 %v618
      %v710 = vunpack.c.l.b16 %v619
      %v711 = vunpack.c.l.b16 %v620
      %v712 = vunpack.c.l.b16 %v621
      %v713 = vunpack.c.l.b16 %v622
      %v714 = vunpack.c.l.b16 %v623
      %v715 = vunpack.c.l.b16 %v624
      %v716 = vunpack.c.l.b16 %v625
      %v717 = vunpack.c.l.b16 %v626
      %v718 = vunpack.c.l.b16 %v627
      %v719 = vunpack.c.l.b16 %v628
      %v720 = vunpack.c.l.b16 %v629
      %v721 = vunpack.c.l.b16 %v630
      %v722 = vunpack.c.l.b16 %v631
      %v723 = vunpack.c.l.b16 %v632
      %v724 = vunpack.c.l.b16 %v633
      %v725 = vunpack.c.l.b16 %v634
      %v726 = vunpack.c.l.b16 %v635
      %v727 = vunpack.c.l.b16 %v636
      %v728 = vunpack.c.l.b16 %v637
      %v729 = vunpack.c.l.b16 %v638
      %v730 = vunpack.c.l.b16 %v639
      %v731 = vunpack.c.l.b16 %v640
      %v732 = vunpack.c.l.b16 %v641
      %v733 = vunpack.c.l.b16 %v642
      %v734 = vunpack.c.l.b16 %v643
      %v735 = vunpack.c.l.b16 %v644
      %v736 = vunpack.c.l.b16 %v645
      %v737 = vunpack.c.l.b16 %v646
      %v738 = vpack.c.b16 %v707, %v706
      %v739 = vpack.c.b16 %v709, %v708
      %v740 = vpack.c.b16 %v711, %v710
      %v741 = vpack.c.b16 %v713, %v712
      %v742 = vpack.c.b16 %v715, %v714
      %v743 = vpack.c.b16 %v717, %v716
      %v744 = vpack.c.b16 %v719, %v718
      %v745 = vpack.c.b16 %v721, %v720
      %v746 = vpack.c.b16 %v723, %v722
      %v747 = vpack.c.b16 %v725, %v724
      %v748 = vpack.c.b16 %v727, %v726
      %v749 = vpack.c.b16 %v729, %v728
      %v750 = vpack.c.b16 %v731, %v730
      %v751 = vpack.c.b16 %v733, %v732
      %v752 = vpack.c.b16 %v735, %v734
      %v753 = vpack.c.b16 %v737, %v736
      %770 = vmatprep.subr.bf16.mxu0 0
      %771 = vmatpush1.bf16.msra.mxu0 %v738
      %772 = vmatprep.subr.bf16.mxu0 0
      %773 = vmatpush1.bf16.msra.mxu0 %v739
      %774 = vmatprep.subr.bf16.mxu0 0
      %775 = vmatpush1.bf16.msra.mxu0 %v740
      %776 = vmatprep.subr.bf16.mxu0 0
      %777 = vmatpush1.bf16.msra.mxu0 %v741
      %778 = vmatprep.subr.bf16.mxu0 0
      %779 = vmatpush1.bf16.msra.mxu0 %v742
      %780 = vmatprep.subr.bf16.mxu0 0
      %781 = vmatpush1.bf16.msra.mxu0 %v743
      %782 = vmatprep.subr.bf16.mxu0 0
      %783 = vmatpush1.bf16.msra.mxu0 %v744
      %784 = vmatprep.subr.bf16.mxu0 0
      %785 = vmatpush1.bf16.msra.mxu0 %v745
      %786 = vmatprep.subr.bf16.mxu0 0
      %787 = vmatpush1.bf16.msra.mxu0 %v746
      %788 = vmatprep.subr.bf16.mxu0 0
      %789 = vmatpush1.bf16.msra.mxu0 %v747
      %790 = vmatprep.subr.bf16.mxu0 0
      %791 = vmatpush1.bf16.msra.mxu0 %v748
      %792 = vmatprep.subr.bf16.mxu0 0
      %793 = vmatpush1.bf16.msra.mxu0 %v749
      %794 = vmatprep.subr.bf16.mxu0 0
      %795 = vmatpush1.bf16.msra.mxu0 %v750
      %796 = vmatprep.subr.bf16.mxu0 0
      %797 = vmatpush1.bf16.msra.mxu0 %v751
      %798 = vmatprep.subr.bf16.mxu0 0
      %799 = vmatpush1.bf16.msra.mxu0 %v752
      %800 = vmatprep.subr.bf16.mxu0 0
      %801 = vmatpush1.bf16.msra.mxu0 %v753
      %802 = vmatprep.mubr.bf16.mxu0 %v671
      %803 = vmatmul.mubr.bf16.gmra.mrb[0].mxu0 %v659
      %v804 = vpop.f32.mrb[0].mxu0
      %v805 = vadd.f32 %v651, %v804
      %v806 = vpop.f32.mrb[0].mxu0
      %v807 = vpop.f32.mrb[0].mxu0
      %v808 = vadd.f32 %v651, %v807
      %v809 = vpop.f32.mrb[0].mxu0
      %810 = vdwg.mxu0
      %v811 = vmax.f32 %v805, 0.0
      %v812 = vmax.f32 %v808, 0.0
      %v813 = vld [vmem:[%s5] sm:$0xf]
      %v814 = vld [vmem:[%s5 + $0x4] sm:$0xf]
      %v815 = vld [vmem:[%s5 + $0x8] sm:$0xf]
      %v816 = vld [vmem:[%s5 + $0xc] sm:$0xf]
      %v817 = vld [vmem:[%s5 + $0x10] sm:$0xf]
      %v818 = vld [vmem:[%s5 + $0x14] sm:$0xf]
      %v819 = vld [vmem:[%s5 + $0x18] sm:$0xf]
      %v820 = vld [vmem:[%s5 + $0x1c] sm:$0xf]
      %v821 = vld [vmem:[%s5 + $0x20] sm:$0xf]
      %v822 = vld [vmem:[%s5 + $0x24] sm:$0xf]
      %v823 = vld [vmem:[%s5 + $0x28] sm:$0xf]
      %v824 = vld [vmem:[%s5 + $0x2c] sm:$0xf]
      %v825 = vld [vmem:[%s5 + $0x30] sm:$0xf]
      %v826 = vld [vmem:[%s5 + $0x34] sm:$0xf]
      %v827 = vld [vmem:[%s5 + $0x38] sm:$0xf]
      %v828 = vld [vmem:[%s5 + $0x3c] sm:$0xf]
      %v829 = vld [vmem:[%s6] sm:$0x1]
      %v831 = vlaneseq
      %v832 = vshrl.u32 %v831, 7
      %v833 = vsub.s32 0, %v832
      %v834 = vrot.slane %v829, %v833
      %v852 = vunpack.c.l.b16 %v813
      %v853 = vunpack.c.l.b16 %v814
      %v854 = vunpack.c.l.b16 %v815
      %v855 = vunpack.c.l.b16 %v816
      %v856 = vunpack.c.l.b16 %v817
      %v857 = vunpack.c.l.b16 %v818
      %v858 = vunpack.c.l.b16 %v819
      %v859 = vunpack.c.l.b16 %v820
      %v860 = vunpack.c.l.b16 %v821
      %v861 = vunpack.c.l.b16 %v822
      %v862 = vunpack.c.l.b16 %v823
      %v863 = vunpack.c.l.b16 %v824
      %v864 = vunpack.c.l.b16 %v825
      %v865 = vunpack.c.l.b16 %v826
      %v866 = vunpack.c.l.b16 %v827
      %v867 = vunpack.c.l.b16 %v828
      %v868 = vpack.c.b16 %v853, %v852
      %v869 = vpack.c.b16 %v855, %v854
      %v870 = vpack.c.b16 %v857, %v856
      %v871 = vpack.c.b16 %v859, %v858
      %v872 = vpack.c.b16 %v861, %v860
      %v873 = vpack.c.b16 %v863, %v862
      %v874 = vpack.c.b16 %v865, %v864
      %v875 = vpack.c.b16 %v867, %v866
      %884 = vmatprep.subr.bf16.mxu0 0
      %885 = vmatpush1.bf16.msra.mxu0 %v868
      %886 = vmatprep.subr.bf16.mxu0 0
      %887 = vmatpush1.bf16.msra.mxu0 %v869
      %888 = vmatprep.subr.bf16.mxu0 0
      %889 = vmatpush1.bf16.msra.mxu0 %v870
      %890 = vmatprep.subr.bf16.mxu0 0
      %891 = vmatpush1.bf16.msra.mxu0 %v871
      %892 = vmatprep.subr.bf16.mxu0 0
      %893 = vmatpush1.bf16.msra.mxu0 %v872
      %894 = vmatprep.subr.bf16.mxu0 0
      %895 = vmatpush1.bf16.msra.mxu0 %v873
      %896 = vmatprep.subr.bf16.mxu0 0
      %897 = vmatpush1.bf16.msra.mxu0 %v874
      %898 = vmatprep.subr.bf16.mxu0 0
      %899 = vmatpush1.bf16.msra.mxu0 %v875
      %900 = vmatprep.subr.bf16.mxu0 0
      %901 = vmatpush1.bf16.msra.mxu0 0
      %902 = vmatprep.subr.bf16.mxu0 0
      %903 = vmatpush1.bf16.msra.mxu0 0
      %904 = vmatprep.subr.bf16.mxu0 0
      %905 = vmatpush1.bf16.msra.mxu0 0
      %906 = vmatprep.subr.bf16.mxu0 0
      %907 = vmatpush1.bf16.msra.mxu0 0
      %908 = vmatprep.subr.bf16.mxu0 0
      %909 = vmatpush1.bf16.msra.mxu0 0
      %910 = vmatprep.subr.bf16.mxu0 0
      %911 = vmatpush1.bf16.msra.mxu0 0
      %912 = vmatprep.subr.bf16.mxu0 0
      %913 = vmatpush1.bf16.msra.mxu0 0
      %914 = vmatprep.subr.bf16.mxu0 0
      %915 = vmatpush1.bf16.msra.mxu0 0
      %916 = vmatprep.mubr.bf16.mxu0 0
      %917 = vmatmul.mubr.bf16.gmra.mrb[0].mxu0 %v391
      %v918 = vpop.f32.mrb[0].mxu0
      %v919 = vadd.f32 %v834, %v918
      %v920 = vpop.f32.mrb[0].mxu0
      %v921 = vpop.f32.mrb[0].mxu0
      %v922 = vadd.f32 %v834, %v921
      %v923 = vpop.f32.mrb[0].mxu0
      %924 = vdwg.mxu0
      %v925 = vadd.f32 %v811, %v919
      %v926 = vadd.f32 %v812, %v922
      %v927 = vmax.f32 %v925, 0.0
      %v928 = vmax.f32 %v926, 0.0
      %929 = vst [vmem:[#allocation2] sm:$0xff] 0
      %v930 = vpack.c.bf16 %v928, %v927
      %931 = vst [vmem:[#allocation2 + $0x8] sm:$0xff] %v930
      %v932 = vld [vmem:[#allocation2] sm:$0x80]
      %v933 = vld [vmem:[#allocation2 + $0x8] sm:$0x7f]
      %v934 = vld [vmem:[#allocation2 + $0x8] sm:$0xff]
      %v936 = vrot.slane %v934, 1
      %v937 = vld [vmem:[%s8] sm:$0x1]
      %v938 = vld [vmem:[%s7] sm:$0xf]
      %v939 = vld [vmem:[%s7 + $0x4] sm:$0xf]
      %v940 = vld [vmem:[%s7 + $0x8] sm:$0xf]
      %v941 = vld [vmem:[%s7 + $0xc] sm:$0xf]
      %v942 = vld [vmem:[%s7 + $0x10] sm:$0xf]
      %v943 = vld [vmem:[%s7 + $0x14] sm:$0xf]
      %v944 = vld [vmem:[%s7 + $0x18] sm:$0xf]
      %v945 = vld [vmem:[%s7 + $0x1c] sm:$0xf]
      %v946 = vld [vmem:[%s7 + $0x20] sm:$0xf]
      %v947 = vld [vmem:[%s7 + $0x24] sm:$0xf]
      %v948 = vld [vmem:[%s7 + $0x28] sm:$0xf]
      %v949 = vld [vmem:[%s7 + $0x2c] sm:$0xf]
      %v950 = vld [vmem:[%s7 + $0x30] sm:$0xf]
      %v951 = vld [vmem:[%s7 + $0x34] sm:$0xf]
      %v952 = vld [vmem:[%s7 + $0x38] sm:$0xf]
      %v953 = vld [vmem:[%s7 + $0x3c] sm:$0xf]
      %v954 = vld [vmem:[%s7 + $0x40] sm:$0xf]
      %v955 = vld [vmem:[%s7 + $0x44] sm:$0xf]
      %v956 = vld [vmem:[%s7 + $0x48] sm:$0xf]
      %v957 = vld [vmem:[%s7 + $0x4c] sm:$0xf]
      %v958 = vld [vmem:[%s7 + $0x50] sm:$0xf]
      %v959 = vld [vmem:[%s7 + $0x54] sm:$0xf]
      %v960 = vld [vmem:[%s7 + $0x58] sm:$0xf]
      %v961 = vld [vmem:[%s7 + $0x5c] sm:$0xf]
      %v962 = vld [vmem:[%s7 + $0x60] sm:$0xf]
      %v963 = vld [vmem:[%s7 + $0x64] sm:$0xf]
      %v964 = vld [vmem:[%s7 + $0x68] sm:$0xf]
      %v965 = vld [vmem:[%s7 + $0x6c] sm:$0xf]
      %v966 = vld [vmem:[%s7 + $0x70] sm:$0xf]
      %v967 = vld [vmem:[%s7 + $0x74] sm:$0xf]
      %v968 = vld [vmem:[%s7 + $0x78] sm:$0xf]
      %v969 = vld [vmem:[%s7 + $0x7c] sm:$0xf]
      %v971 = vlaneseq
      %v972 = vshrl.u32 %v971, 7
      %v973 = vsub.s32 0, %v972
      %v974 = vrot.slane %v937, %v973
      %vm978 = vcmask 1040384
      %v979 = vrot.slane %v932, 7
      %v980 = vrot.slane %v933, 7
      %v981 = vsel %vm978, %v979, %v980
      %v982 = vrot.slane %v936, 7
      %v983 = vsel %vm978, %v982, %v982
      %v1018 = vunpack.c.l.b16 %v938
      %v1019 = vunpack.c.l.b16 %v939
      %v1020 = vunpack.c.l.b16 %v940
      %v1021 = vunpack.c.l.b16 %v941
      %v1022 = vunpack.c.l.b16 %v942
      %v1023 = vunpack.c.l.b16 %v943
      %v1024 = vunpack.c.l.b16 %v944
      %v1025 = vunpack.c.l.b16 %v945
      %v1026 = vunpack.c.l.b16 %v946
      %v1027 = vunpack.c.l.b16 %v947
      %v1028 = vunpack.c.l.b16 %v948
      %v1029 = vunpack.c.l.b16 %v949
      %v1030 = vunpack.c.l.b16 %v950
      %v1031 = vunpack.c.l.b16 %v951
      %v1032 = vunpack.c.l.b16 %v952
      %v1033 = vunpack.c.l.b16 %v953
      %v1034 = vunpack.c.l.b16 %v954
      %v1035 = vunpack.c.l.b16 %v955
      %v1036 = vunpack.c.l.b16 %v956
      %v1037 = vunpack.c.l.b16 %v957
      %v1038 = vunpack.c.l.b16 %v958
      %v1039 = vunpack.c.l.b16 %v959
      %v1040 = vunpack.c.l.b16 %v960
      %v1041 = vunpack.c.l.b16 %v961
      %v1042 = vunpack.c.l.b16 %v962
      %v1043 = vunpack.c.l.b16 %v963
      %v1044 = vunpack.c.l.b16 %v964
      %v1045 = vunpack.c.l.b16 %v965
      %v1046 = vunpack.c.l.b16 %v966
      %v1047 = vunpack.c.l.b16 %v967
      %v1048 = vunpack.c.l.b16 %v968
      %v1049 = vunpack.c.l.b16 %v969
      %v1050 = vpack.c.b16 %v1019, %v1018
      %v1051 = vpack.c.b16 %v1021, %v1020
      %v1052 = vpack.c.b16 %v1023, %v1022
      %v1053 = vpack.c.b16 %v1025, %v1024
      %v1054 = vpack.c.b16 %v1027, %v1026
      %v1055 = vpack.c.b16 %v1029, %v1028
      %v1056 = vpack.c.b16 %v1031, %v1030
      %v1057 = vpack.c.b16 %v1033, %v1032
      %v1058 = vpack.c.b16 %v1035, %v1034
      %v1059 = vpack.c.b16 %v1037, %v1036
      %v1060 = vpack.c.b16 %v1039, %v1038
      %v1061 = vpack.c.b16 %v1041, %v1040
      %v1062 = vpack.c.b16 %v1043, %v1042
      %v1063 = vpack.c.b16 %v1045, %v1044
      %v1064 = vpack.c.b16 %v1047, %v1046
      %v1065 = vpack.c.b16 %v1049, %v1048
      %1082 = vmatprep.subr.bf16.mxu0 0
      %1083 = vmatpush1.bf16.msra.mxu0 %v1050
      %1084 = vmatprep.subr.bf16.mxu0 0
      %1085 = vmatpush1.bf16.msra.mxu0 %v1051
      %1086 = vmatprep.subr.bf16.mxu0 0
      %1087 = vmatpush1.bf16.msra.mxu0 %v1052
      %1088 = vmatprep.subr.bf16.mxu0 0
      %1089 = vmatpush1.bf16.msra.mxu0 %v1053
      %1090 = vmatprep.subr.bf16.mxu0 0
      %1091 = vmatpush1.bf16.msra.mxu0 %v1054
      %1092 = vmatprep.subr.bf16.mxu0 0
      %1093 = vmatpush1.bf16.msra.mxu0 %v1055
      %1094 = vmatprep.subr.bf16.mxu0 0
      %1095 = vmatpush1.bf16.msra.mxu0 %v1056
      %1096 = vmatprep.subr.bf16.mxu0 0
      %1097 = vmatpush1.bf16.msra.mxu0 %v1057
      %1098 = vmatprep.subr.bf16.mxu0 0
      %1099 = vmatpush1.bf16.msra.mxu0 %v1058
      %1100 = vmatprep.subr.bf16.mxu0 0
      %1101 = vmatpush1.bf16.msra.mxu0 %v1059
      %1102 = vmatprep.subr.bf16.mxu0 0
      %1103 = vmatpush1.bf16.msra.mxu0 %v1060
      %1104 = vmatprep.subr.bf16.mxu0 0
      %1105 = vmatpush1.bf16.msra.mxu0 %v1061
      %1106 = vmatprep.subr.bf16.mxu0 0
      %1107 = vmatpush1.bf16.msra.mxu0 %v1062
      %1108 = vmatprep.subr.bf16.mxu0 0
      %1109 = vmatpush1.bf16.msra.mxu0 %v1063
      %1110 = vmatprep.subr.bf16.mxu0 0
      %1111 = vmatpush1.bf16.msra.mxu0 %v1064
      %1112 = vmatprep.subr.bf16.mxu0 0
      %1113 = vmatpush1.bf16.msra.mxu0 %v1065
      %1114 = vmatprep.mubr.bf16.mxu0 %v983
      %1115 = vmatmul.mubr.bf16.gmra.mrb[0].mxu0 %v981
      %v1116 = vpop.f32.mrb[0].mxu0
      %v1117 = vadd.f32 %v974, %v1116
      %v1118 = vpop.f32.mrb[0].mxu0
      %v1119 = vpop.f32.mrb[0].mxu0
      %v1120 = vadd.f32 %v974, %v1119
      %v1121 = vpop.f32.mrb[0].mxu0
      %1122 = vdwg.mxu0
      %v1123 = vmax.f32 %v1117, 0.0
      %v1124 = vmax.f32 %v1120, 0.0
      %1125 = vst [vmem:[#allocation3] sm:$0xff] 0
      %v1126 = vpack.c.bf16 %v1124, %v1123
      %1127 = vst [vmem:[#allocation3 + $0x8] sm:$0xff] %v1126
      %v1128 = vld [vmem:[#allocation3] sm:$0x80]
      %v1129 = vld [vmem:[#allocation3 + $0x8] sm:$0x7f]
      %v1130 = vld [vmem:[#allocation3 + $0x8] sm:$0xff]
      %v1132 = vrot.slane %v1130, 1
      %v1133 = vld [vmem:[%s10] sm:$0x1]
      %v1134 = vld [vmem:[%s9] sm:$0xf]
      %v1135 = vld [vmem:[%s9 + $0x4] sm:$0xf]
      %v1136 = vld [vmem:[%s9 + $0x8] sm:$0xf]
      %v1137 = vld [vmem:[%s9 + $0xc] sm:$0xf]
      %v1138 = vld [vmem:[%s9 + $0x10] sm:$0xf]
      %v1139 = vld [vmem:[%s9 + $0x14] sm:$0xf]
      %v1140 = vld [vmem:[%s9 + $0x18] sm:$0xf]
      %v1141 = vld [vmem:[%s9 + $0x1c] sm:$0xf]
      %v1142 = vld [vmem:[%s9 + $0x20] sm:$0xf]
      %v1143 = vld [vmem:[%s9 + $0x24] sm:$0xf]
      %v1144 = vld [vmem:[%s9 + $0x28] sm:$0xf]
      %v1145 = vld [vmem:[%s9 + $0x2c] sm:$0xf]
      %v1146 = vld [vmem:[%s9 + $0x30] sm:$0xf]
      %v1147 = vld [vmem:[%s9 + $0x34] sm:$0xf]
      %v1148 = vld [vmem:[%s9 + $0x38] sm:$0xf]
      %v1149 = vld [vmem:[%s9 + $0x3c] sm:$0xf]
      %v1150 = vld [vmem:[%s9 + $0x40] sm:$0xf]
      %v1151 = vld [vmem:[%s9 + $0x44] sm:$0xf]
      %v1152 = vld [vmem:[%s9 + $0x48] sm:$0xf]
      %v1153 = vld [vmem:[%s9 + $0x4c] sm:$0xf]
      %v1154 = vld [vmem:[%s9 + $0x50] sm:$0xf]
      %v1155 = vld [vmem:[%s9 + $0x54] sm:$0xf]
      %v1156 = vld [vmem:[%s9 + $0x58] sm:$0xf]
      %v1157 = vld [vmem:[%s9 + $0x5c] sm:$0xf]
      %v1158 = vld [vmem:[%s9 + $0x60] sm:$0xf]
      %v1159 = vld [vmem:[%s9 + $0x64] sm:$0xf]
      %v1160 = vld [vmem:[%s9 + $0x68] sm:$0xf]
      %v1161 = vld [vmem:[%s9 + $0x6c] sm:$0xf]
      %v1162 = vld [vmem:[%s9 + $0x70] sm:$0xf]
      %v1163 = vld [vmem:[%s9 + $0x74] sm:$0xf]
      %v1164 = vld [vmem:[%s9 + $0x78] sm:$0xf]
      %v1165 = vld [vmem:[%s9 + $0x7c] sm:$0xf]
      %v1167 = vlaneseq
      %v1168 = vshrl.u32 %v1167, 7
      %v1169 = vsub.s32 0, %v1168
      %v1170 = vrot.slane %v1133, %v1169
      %v1174 = vrot.slane %v1128, 7
      %v1175 = vrot.slane %v1129, 7
      %v1176 = vsel %vm978, %v1174, %v1175
      %v1177 = vrot.slane %v1132, 7
      %v1178 = vsel %vm978, %v1177, %v1177
      %v1213 = vunpack.c.l.b16 %v1134
      %v1214 = vunpack.c.l.b16 %v1135
      %v1215 = vunpack.c.l.b16 %v1136
      %v1216 = vunpack.c.l.b16 %v1137
      %v1217 = vunpack.c.l.b16 %v1138
      %v1218 = vunpack.c.l.b16 %v1139
      %v1219 = vunpack.c.l.b16 %v1140
      %v1220 = vunpack.c.l.b16 %v1141
      %v1221 = vunpack.c.l.b16 %v1142
      %v1222 = vunpack.c.l.b16 %v1143
      %v1223 = vunpack.c.l.b16 %v1144
      %v1224 = vunpack.c.l.b16 %v1145
      %v1225 = vunpack.c.l.b16 %v1146
      %v1226 = vunpack.c.l.b16 %v1147
      %v1227 = vunpack.c.l.b16 %v1148
      %v1228 = vunpack.c.l.b16 %v1149
      %v1229 = vunpack.c.l.b16 %v1150
      %v1230 = vunpack.c.l.b16 %v1151
      %v1231 = vunpack.c.l.b16 %v1152
      %v1232 = vunpack.c.l.b16 %v1153
      %v1233 = vunpack.c.l.b16 %v1154
      %v1234 = vunpack.c.l.b16 %v1155
      %v1235 = vunpack.c.l.b16 %v1156
      %v1236 = vunpack.c.l.b16 %v1157
      %v1237 = vunpack.c.l.b16 %v1158
      %v1238 = vunpack.c.l.b16 %v1159
      %v1239 = vunpack.c.l.b16 %v1160
      %v1240 = vunpack.c.l.b16 %v1161
      %v1241 = vunpack.c.l.b16 %v1162
      %v1242 = vunpack.c.l.b16 %v1163
      %v1243 = vunpack.c.l.b16 %v1164
      %v1244 = vunpack.c.l.b16 %v1165
      %v1245 = vpack.c.b16 %v1214, %v1213
      %v1246 = vpack.c.b16 %v1216, %v1215
      %v1247 = vpack.c.b16 %v1218, %v1217
      %v1248 = vpack.c.b16 %v1220, %v1219
      %v1249 = vpack.c.b16 %v1222, %v1221
      %v1250 = vpack.c.b16 %v1224, %v1223
      %v1251 = vpack.c.b16 %v1226, %v1225
      %v1252 = vpack.c.b16 %v1228, %v1227
      %v1253 = vpack.c.b16 %v1230, %v1229
      %v1254 = vpack.c.b16 %v1232, %v1231
      %v1255 = vpack.c.b16 %v1234, %v1233
      %v1256 = vpack.c.b16 %v1236, %v1235
      %v1257 = vpack.c.b16 %v1238, %v1237
      %v1258 = vpack.c.b16 %v1240, %v1239
      %v1259 = vpack.c.b16 %v1242, %v1241
      %v1260 = vpack.c.b16 %v1244, %v1243
      %1277 = vmatprep.subr.bf16.mxu0 0
      %1278 = vmatpush1.bf16.msra.mxu0 %v1245
      %1279 = vmatprep.subr.bf16.mxu0 0
      %1280 = vmatpush1.bf16.msra.mxu0 %v1246
      %1281 = vmatprep.subr.bf16.mxu0 0
      %1282 = vmatpush1.bf16.msra.mxu0 %v1247
      %1283 = vmatprep.subr.bf16.mxu0 0
      %1284 = vmatpush1.bf16.msra.mxu0 %v1248
      %1285 = vmatprep.subr.bf16.mxu0 0
      %1286 = vmatpush1.bf16.msra.mxu0 %v1249
      %1287 = vmatprep.subr.bf16.mxu0 0
      %1288 = vmatpush1.bf16.msra.mxu0 %v1250
      %1289 = vmatprep.subr.bf16.mxu0 0
      %1290 = vmatpush1.bf16.msra.mxu0 %v1251
      %1291 = vmatprep.subr.bf16.mxu0 0
      %1292 = vmatpush1.bf16.msra.mxu0 %v1252
      %1293 = vmatprep.subr.bf16.mxu0 0
      %1294 = vmatpush1.bf16.msra.mxu0 %v1253
      %1295 = vmatprep.subr.bf16.mxu0 0
      %1296 = vmatpush1.bf16.msra.mxu0 %v1254
      %1297 = vmatprep.subr.bf16.mxu0 0
      %1298 = vmatpush1.bf16.msra.mxu0 %v1255
      %1299 = vmatprep.subr.bf16.mxu0 0
      %1300 = vmatpush1.bf16.msra.mxu0 %v1256
      %1301 = vmatprep.subr.bf16.mxu0 0
      %1302 = vmatpush1.bf16.msra.mxu0 %v1257
      %1303 = vmatprep.subr.bf16.mxu0 0
      %1304 = vmatpush1.bf16.msra.mxu0 %v1258
      %1305 = vmatprep.subr.bf16.mxu0 0
      %1306 = vmatpush1.bf16.msra.mxu0 %v1259
      %1307 = vmatprep.subr.bf16.mxu0 0
      %1308 = vmatpush1.bf16.msra.mxu0 %v1260
      %1309 = vmatprep.mubr.bf16.mxu0 %v1178
      %1310 = vmatmul.mubr.bf16.gmra.mrb[0].mxu0 %v1176
      %v1311 = vpop.f32.mrb[0].mxu0
      %v1312 = vadd.f32 %v1170, %v1311
      %v1313 = vpop.f32.mrb[0].mxu0
      %v1314 = vpop.f32.mrb[0].mxu0
      %v1315 = vadd.f32 %v1170, %v1314
      %v1316 = vpop.f32.mrb[0].mxu0
      %1317 = vdwg.mxu0
      %v1318 = vmax.f32 %v1312, 0.0
      %v1319 = vmax.f32 %v1315, 0.0
      %v1320 = vadd.f32 %v1318, %v927
      %v1321 = vadd.f32 %v1319, %v928
      %v1322 = vmax.f32 %v1320, 0.0
      %v1323 = vmax.f32 %v1321, 0.0
      %1324 = vst [vmem:[%s386] sm:$0xff] %v1322
      %1325 = vst [vmem:[%s386 + $0x8] sm:$0xff] %v1323
      %p1326 = scmp.lt.s32.totalorder %s22, 1
      %s1327 = scalar_select %p1326, %s22, 1
      %s1328 = smul.addr %s1327, 2
      %s1329 = smul.addr %s1328, 8
      %s1330 = scalar_lea.vmem %s11, %s1329
      // Predicated region
      $region65: #{forward.1} parent=63 // pred_check
        %p1331 = pneg %p276
      $region66: #{forward.1} parent=63 // pred_check_branch
        %1333 = sbr.rel (%p1331) target = $region68
      $region67: #{forward.1} parent=63 // pred_region
        _
      $region68: #{forward.1} parent=63 // pred_fallthru
        _
    $region64: #{forward.1} parent=5 // pred_fallthru
      _
    %p1334 = scmp.le.s32.totalorder 2, %s17
    // Predicated region
    $region69: #{forward.1} parent=5 // pred_check
      %p1335 = pneg %p1334
    $region70: #{forward.1} parent=5 // pred_check_branch
      %1337 = sbr.rel (%p1335) target = $region72
    $region71: #{forward.1} parent=5 // pred_region
      %s1338 = ssub.s32 %s17, 2
      // Predicated region
      $region73: #{forward.1} parent=71 // pred_check
        %p1339 = pneg %p282
      $region74: #{forward.1} parent=71 // pred_check_branch
        %1341 = sbr.rel (%p1339) target = $region76
      $region75: #{forward.1} parent=71 // pred_region
        %p1342 = scmp.lt.s32.totalorder %s23, 1
        %s1343 = scalar_select %p1342, %s23, 1
        %s1344 = smul.addr %s1343, 2
        %s1345 = smul.addr %s1344, 8
        %s1346 = scalar_lea.vmem %s11, %s1345
      $region76: #{forward.1} parent=71 // pred_fallthru
        _
    $region72: #{forward.1} parent=5 // pred_fallthru
      _
  $region6: #{forward.1} parent=0 // loop_footer
    %s21 = sadd.s32 1, %s17
  $region7: #{forward.1} parent=0 // loop_footer_branch
    %16 = sbr.rel target = $region3
  $region8: #{forward.1} parent=0 // loop_exit
    _

</llo_original>
